<compile_context>
chip_gen: v7x
topology: tpu7x:2x2x1
jax: 0.10.0
libtpu: 0.0.40
codegen_flags: <defaults>
</compile_context>

<pallas_src>
import functools

import jax
import jax.numpy as jnp
from jax.experimental import pallas as pl
from jax.experimental.pallas import tpu as pltpu


_SINGLE_BLOCK_MAX_N = 1024   # single-step path: whole matrix fits comfortably
_DEFAULT_TM = 512            # row-block height (>= 2 blocks whenever n > 1024,
                             # so v7x's two TensorCores both get "parallel" work)
_DEFAULT_TN = 1024           # lane-aligned column-tile width (~1-2 MiB DMA/step)
_NEG_BIG = -1e30             # finite "-inf": exp underflows to 0, no NaN


def _vmem_capacity_bytes() -> int:
    """Physical VMEM on this generation (64 MiB v7x, 128 MiB v5e/v6e)."""
    try:
        info = pltpu.get_tpu_info()
        for attr in ("vmem_capacity_bytes", "vmem_bytes", "vmem_capacity"):
            v = getattr(info, attr, None)
            if isinstance(v, int) and v > 0:
                return v
    except Exception:
        pass
    return 64 * 1024 * 1024   # conservative default (v7x size)


def _fit_tile(requested: int, n: int, align: int) -> int:
    """Tile size <= n; either the full dim or a multiple of `align`."""
    t = min(int(requested), n)
    if t >= n:
        return n
    t = max(align, (t // align) * align)
    return n if t >= n else t


def _infonce_kernel(x_ref, out_ref, m_sc, l_sc, d_sc, *, n: int, tm: int, tn: int):
    """One (TM, TN) score tile: online logsumexp + diagonal accumulation."""
    i = pl.program_id(0)          # row block (parallel)
    j = pl.program_id(1)          # column tile (arbitrary / reduction)

    @pl.when(j == 0)
    def _():
        m_sc[...] = jnp.full_like(m_sc, -jnp.inf)   # running row max
        l_sc[...] = jnp.zeros_like(l_sc)            # running sum of exp
        d_sc[...] = jnp.zeros_like(d_sc)            # diagonal (target) value

    # Global row/col ids of this tile; mask the ragged (partially OOB) regions
    # of the last row/column block to a very negative finite value so garbage
    # never reaches max/exp and padded entries underflow to exactly 0.
    row_ids = i * tm + jax.lax.broadcasted_iota(jnp.int32, (tm, tn), 0)
    col_ids = j * tn + jax.lax.broadcasted_iota(jnp.int32, (tm, tn), 1)
    valid = jnp.logical_and(row_ids < n, col_ids < n)

    # Per-tile f32 upcast only (tile-bounded temporaries, never a full strip).
    s = jnp.where(valid, x_ref[...].astype(jnp.float32), jnp.float32(_NEG_BIG))

    # Online (streaming) logsumexp across column tiles.
    tile_max = jnp.max(s, axis=-1, keepdims=True)                 # (TM, 1)
    m_new = jnp.maximum(m_sc[...], tile_max)
    alpha = jnp.exp(m_sc[...] - m_new)
    l_sc[...] = alpha * l_sc[...] + jnp.sum(jnp.exp(s - m_new),
                                            axis=-1, keepdims=True)
    m_sc[...] = m_new

    # Diagonal (targets scores[r, r]) — only in column tiles that intersect the
    # diagonal band of this row block; extracted from the resident tile, no
    # extra DMA stream.
    @pl.when(jnp.logical_and(i * tm < (j + 1) * tn, j * tn < (i + 1) * tm))
    def _():
        d_sc[...] += jnp.sum(jnp.where(row_ids == col_ids, s, jnp.float32(0.0)),
                             axis=-1, keepdims=True)

    @pl.when(j == pl.num_programs(1) - 1)
    def _():
        lse = jnp.log(l_sc[...]) + m_sc[...]                      # (TM, 1)
        rid = i * tm + jax.lax.broadcasted_iota(jnp.int32, (tm, 1), 0)
        contrib = jnp.where(rid < n, lse - d_sc[...], jnp.float32(0.0))
        # Lane-dense per-row-block partial (unmasked vst).
        out_ref[...] = jnp.full(out_ref.shape, jnp.sum(contrib),
                                dtype=out_ref.dtype)


def infonce(scores: jax.Array,
            *,
            block_rows: int | None = None,
            block_cols: int | None = None) -> jax.Array:
    """Scalar InfoNCE objective; same value as the PyTorch module's forward."""
    n = scores.shape[0]
    assert scores.ndim == 2 and scores.shape == (n, n), "scores must be (n, n)"
    itemsize = jnp.dtype(scores.dtype).itemsize

    if block_rows is None and block_cols is None and n <= _SINGLE_BLOCK_MAX_N:
        tm, tn = n, n                        # single step: one DMA, one pass
    else:
        tm = _fit_tile(block_rows if block_rows is not None else _DEFAULT_TM,
                       n, 8)                 # sublane aligned
        tn = _fit_tile(block_cols if block_cols is not None else _DEFAULT_TN,
                       n, 128)               # lane aligned

    num_i = (n + tm - 1) // tm
    num_j = (n + tn - 1) // tn

    # Working set: double-buffered input tile + per-tile f32 temporaries +
    # tiny scratch accumulators; clamp under the generation's physical VMEM.
    need = (2 * tm * tn * itemsize           # pipelined input tiles
            + 4 * tm * tn * 4                # f32 upcast / exp / mask temps
            + 3 * tm * 4                     # (TM, 1) accumulators
            + (4 << 20))                     # headroom
    cap = max(16 << 20, _vmem_capacity_bytes() - (16 << 20))
    vmem_bytes = int(min(max(need, 16 << 20), cap))

    kernel = functools.partial(_infonce_kernel, n=n, tm=tm, tn=tn)

    partials = pl.pallas_call(
        kernel,
        out_shape=jax.ShapeDtypeStruct((num_i, 1, 128), jnp.float32),
        grid_spec=pltpu.PrefetchScalarGridSpec(
            num_scalar_prefetch=0,
            grid=(num_i, num_j),
            in_specs=[pl.BlockSpec((tm, tn), lambda i, j: (i, j))],
            out_specs=pl.BlockSpec((1, 1, 128), lambda i, j: (i, 0, 0)),
            scratch_shapes=[pltpu.VMEM((tm, 1), jnp.float32)] * 3,
        ),
        compiler_params=pltpu.CompilerParams(
            dimension_semantics=("parallel", "arbitrary"),
            vmem_limit_bytes=vmem_bytes,
        ),
    )(scores)

    n_f = jnp.float32(n)
    # Tiny final reduce of per-row-block partials outside the kernel.
    return jnp.sum(partials[:, 0, 0]) / n_f - jnp.log(n_f)


def _reference(scores: jax.Array) -> jax.Array:
    n = scores.shape[0]
    s = scores.astype(jnp.float32)
    lse = jax.nn.logsumexp(s, axis=-1)
    return jnp.mean(lse - jnp.diag(s)) - jnp.log(jnp.float32(n))


if __name__ == "__main__":
    key = jax.random.PRNGKey(0)
    k0, k1, k2 = jax.random.split(key, 3)

    # Main example: n = 256 f32 -> single-block fast path (one DMA, one pass).
    n = 256
    scores = jax.random.normal(k0, (n, n), dtype=jnp.float32)
    result = infonce(scores)
    jax.block_until_ready(result)
    assert jnp.allclose(result, _reference(scores), atol=1e-4, rtol=1e-4), (
        result, _reference(scores))

    # Ragged n with forced 2-D tiling: exercises the online logsumexp,
    # in-kernel row/column masking of partially-OOB blocks (no host-side pad),
    # and the in-tile diagonal extraction.
    n2 = 200
    scores2 = jax.random.normal(k1, (n2, n2), dtype=jnp.float32)
    r2 = infonce(scores2, block_rows=128, block_cols=128)
    jax.block_until_ready(r2)
    assert jnp.allclose(r2, _reference(scores2), atol=1e-4, rtol=1e-4), (
        r2, _reference(scores2))

    # bf16 scores with forced 2-D tiling: per-tile f32 upcast path.
    scores3 = jax.random.normal(k2, (n, n), dtype=jnp.float32).astype(jnp.bfloat16)
    r3 = infonce(scores3, block_rows=128, block_cols=128)
    jax.block_until_ready(r3)
    assert jnp.allclose(r3, _reference(scores3), atol=2e-3, rtol=2e-3), (
        r3, _reference(scores3))

    # Tiny n: single-block path with non-(8,128)-aligned full-dim block.
    n4 = 8
    scores4 = jax.random.normal(k0, (n4, n4), dtype=jnp.float32)
    r4 = infonce(scores4)
    jax.block_until_ready(r4)
    assert jnp.allclose(r4, _reference(scores4), atol=1e-5, rtol=1e-5), (
        r4, _reference(scores4))

    print("KERNEL_OK")
</pallas_src>

<mosaic_0001>
module attributes {stable_mosaic.version = 11 : i64} {
  func.func @_infonce_kernel(%arg0: i32, %arg1: i32, %arg2: memref<256x256xf32, #tpu.memory_space<vmem>>, %arg3: memref<1x1x128xf32, #tpu.memory_space<vmem>>, %arg4: memref<256x1xf32, #tpu.memory_space<vmem>>, %arg5: memref<256x1xf32, #tpu.memory_space<vmem>>, %arg6: memref<256x1xf32, #tpu.memory_space<vmem>>) attributes {dimension_semantics = [#tpu.dimension_semantics<parallel>, #tpu.dimension_semantics<arbitrary>], iteration_bounds = array<i64: 1, 1>, scalar_prefetch = 0 : i64, scratch_operands = 3 : i64, tpu.core_type = #tpu.core_type<tc>, window_params = [{transform_indices = @transform_0, window_bounds = array<i64: 256, 256>}, {transform_indices = @transform_1, window_bounds = array<i64: 1, 1, 128>}]} {
    %c0_i32 = arith.constant 0 : i32
    %0 = arith.cmpi eq, %arg1, %c0_i32 : i32
    %1 = arith.extui %0 : i1 to i32
    %c0_i32_0 = arith.constant 0 : i32
    %2 = arith.cmpi ne, %1, %c0_i32_0 : i32
    scf.if %2 {
      %cst_25 = arith.constant 0xFF800000 : f32
      %50 = vector.broadcast %cst_25 : f32 to vector<256x1xf32>
      %c0_26 = arith.constant 0 : index
      %c0_27 = arith.constant 0 : index
      %51 = vector.load %arg4[%c0_26, %c0_27] : memref<256x1xf32, #tpu.memory_space<vmem>>, vector<256x1xf32>
      tpu.vector_store %arg4[%c0_26, %c0_27], %50 {strides = array<i32>} : memref<256x1xf32, #tpu.memory_space<vmem>>, vector<256x1xf32>,
      %cst_28 = arith.constant 0.000000e+00 : f32
      %52 = vector.broadcast %cst_28 : f32 to vector<256x1xf32>
      %c0_29 = arith.constant 0 : index
      %c0_30 = arith.constant 0 : index
      %53 = vector.load %arg5[%c0_29, %c0_30] : memref<256x1xf32, #tpu.memory_space<vmem>>, vector<256x1xf32>
      tpu.vector_store %arg5[%c0_29, %c0_30], %52 {strides = array<i32>} : memref<256x1xf32, #tpu.memory_space<vmem>>, vector<256x1xf32>,
      %cst_31 = arith.constant 0.000000e+00 : f32
      %54 = vector.broadcast %cst_31 : f32 to vector<256x1xf32>
      %c0_32 = arith.constant 0 : index
      %c0_33 = arith.constant 0 : index
      %55 = vector.load %arg6[%c0_32, %c0_33] : memref<256x1xf32, #tpu.memory_space<vmem>>, vector<256x1xf32>
      tpu.vector_store %arg6[%c0_32, %c0_33], %54 {strides = array<i32>} : memref<256x1xf32, #tpu.memory_space<vmem>>, vector<256x1xf32>,
    } else {
    }
    %c256_i32 = arith.constant 256 : i32
    %3 = arith.muli %arg0, %c256_i32 : i32
    %4 = tpu.iota {dimensions = array<i32: 0>} : vector<256x256xi32>
    %5 = vector.broadcast %3 : i32 to vector<256x256xi32>
    %6 = arith.addi %5, %4 : vector<256x256xi32>
    %c256_i32_1 = arith.constant 256 : i32
    %7 = arith.muli %arg1, %c256_i32_1 : i32
    %8 = tpu.iota {dimensions = array<i32: 1>} : vector<256x256xi32>
    %9 = vector.broadcast %7 : i32 to vector<256x256xi32>
    %10 = arith.addi %9, %8 : vector<256x256xi32>
    %c256_i32_2 = arith.constant 256 : i32
    %11 = vector.broadcast %c256_i32_2 : i32 to vector<256x256xi32>
    %12 = arith.cmpi slt, %6, %11 : vector<256x256xi32>
    %c256_i32_3 = arith.constant 256 : i32
    %13 = vector.broadcast %c256_i32_3 : i32 to vector<256x256xi32>
    %14 = arith.cmpi slt, %10, %13 : vector<256x256xi32>
    %15 = arith.andi %12, %14 : vector<256x256xi1>
    %c0 = arith.constant 0 : index
    %c0_4 = arith.constant 0 : index
    %16 = vector.load %arg2[%c0, %c0_4] : memref<256x256xf32, #tpu.memory_space<vmem>>, vector<256x256xf32>
    %cst = arith.constant -1.000000e+30 : f32
    %17 = vector.broadcast %cst : f32 to vector<256x256xf32>
    %18 = arith.select %15, %16, %17 : vector<256x256xi1>, vector<256x256xf32>
    %cst_5 = arith.constant dense<0xFF800000> : vector<256xf32>
    %19 = vector.multi_reduction <maximumf>, %18, %cst_5 [1] : vector<256x256xf32> to vector<256xf32>
    %20 = vector.shape_cast %19 : vector<256xf32> to vector<256x1xf32>
    %c0_6 = arith.constant 0 : index
    %c0_7 = arith.constant 0 : index
    %21 = vector.load %arg4[%c0_6, %c0_7] : memref<256x1xf32, #tpu.memory_space<vmem>>, vector<256x1xf32>
    %22 = arith.maximumf %21, %20 : vector<256x1xf32>
    %c0_8 = arith.constant 0 : index
    %c0_9 = arith.constant 0 : index
    %23 = vector.load %arg4[%c0_8, %c0_9] : memref<256x1xf32, #tpu.memory_space<vmem>>, vector<256x1xf32>
    %24 = arith.subf %23, %22 : vector<256x1xf32>
    %25 = math.exp %24 : vector<256x1xf32>
    %c0_10 = arith.constant 0 : index
    %c0_11 = arith.constant 0 : index
    %26 = vector.load %arg5[%c0_10, %c0_11] : memref<256x1xf32, #tpu.memory_space<vmem>>, vector<256x1xf32>
    %27 = arith.mulf %25, %26 : vector<256x1xf32>
    %28 = vector.broadcast %22 : vector<256x1xf32> to vector<256x256xf32>
    %29 = arith.subf %18, %28 : vector<256x256xf32>
    %30 = math.exp %29 : vector<256x256xf32>
    %cst_12 = arith.constant dense<0.000000e+00> : vector<256xf32>
    %31 = vector.multi_reduction <add>, %30, %cst_12 [1] : vector<256x256xf32> to vector<256xf32>
    %32 = vector.shape_cast %31 : vector<256xf32> to vector<256x1xf32>
    %33 = arith.addf %27, %32 : vector<256x1xf32>
    %c0_13 = arith.constant 0 : index
    %c0_14 = arith.constant 0 : index
    %34 = vector.load %arg5[%c0_13, %c0_14] : memref<256x1xf32, #tpu.memory_space<vmem>>, vector<256x1xf32>
    tpu.vector_store %arg5[%c0_13, %c0_14], %33 {strides = array<i32>} : memref<256x1xf32, #tpu.memory_space<vmem>>, vector<256x1xf32>,
    %c0_15 = arith.constant 0 : index
    %c0_16 = arith.constant 0 : index
    %35 = vector.load %arg4[%c0_15, %c0_16] : memref<256x1xf32, #tpu.memory_space<vmem>>, vector<256x1xf32>
    tpu.vector_store %arg4[%c0_15, %c0_16], %22 {strides = array<i32>} : memref<256x1xf32, #tpu.memory_space<vmem>>, vector<256x1xf32>,
    %c256_i32_17 = arith.constant 256 : i32
    %36 = arith.muli %arg0, %c256_i32_17 : i32
    %c1_i32 = arith.constant 1 : i32
    %37 = arith.addi %arg1, %c1_i32 : i32
    %c256_i32_18 = arith.constant 256 : i32
    %38 = arith.muli %37, %c256_i32_18 : i32
    %39 = arith.cmpi slt, %36, %38 : i32
    %c256_i32_19 = arith.constant 256 : i32
    %40 = arith.muli %arg1, %c256_i32_19 : i32
    %c1_i32_20 = arith.constant 1 : i32
    %41 = arith.addi %arg0, %c1_i32_20 : i32
    %c256_i32_21 = arith.constant 256 : i32
    %42 = arith.muli %41, %c256_i32_21 : i32
    %43 = arith.cmpi slt, %40, %42 : i32
    %44 = arith.andi %39, %43 : i1
    %45 = arith.extui %44 : i1 to i32
    %c0_i32_22 = arith.constant 0 : i32
    %46 = arith.cmpi ne, %45, %c0_i32_22 : i32
    scf.if %46 {
      %c0_25 = arith.constant 0 : index
      %c0_26 = arith.constant 0 : index
      %50 = vector.load %arg6[%c0_25, %c0_26] : memref<256x1xf32, #tpu.memory_space<vmem>>, vector<256x1xf32>
      %51 = arith.cmpi eq, %6, %10 : vector<256x256xi32>
      %cst_27 = arith.constant 0.000000e+00 : f32
      %52 = vector.broadcast %cst_27 : f32 to vector<256x256xf32>
      %53 = arith.select %51, %18, %52 : vector<256x256xi1>, vector<256x256xf32>
      %cst_28 = arith.constant dense<0.000000e+00> : vector<256xf32>
      %54 = vector.multi_reduction <add>, %53, %cst_28 [1] : vector<256x256xf32> to vector<256xf32>
      %55 = vector.shape_cast %54 : vector<256xf32> to vector<256x1xf32>
      %56 = arith.addf %50, %55 : vector<256x1xf32>
      %c0_29 = arith.constant 0 : index
      %c0_30 = arith.constant 0 : index
      %57 = vector.load %arg6[%c0_29, %c0_30] : memref<256x1xf32, #tpu.memory_space<vmem>>, vector<256x1xf32>
      tpu.vector_store %arg6[%c0_29, %c0_30], %56 {strides = array<i32>} : memref<256x1xf32, #tpu.memory_space<vmem>>, vector<256x1xf32>,
    } else {
    }
    %c0_i32_23 = arith.constant 0 : i32
    %47 = arith.cmpi eq, %arg1, %c0_i32_23 : i32
    %48 = arith.extui %47 : i1 to i32
    %c0_i32_24 = arith.constant 0 : i32
    %49 = arith.cmpi ne, %48, %c0_i32_24 : i32
    scf.if %49 {
      %c0_25 = arith.constant 0 : index
      %c0_26 = arith.constant 0 : index
      %50 = vector.load %arg5[%c0_25, %c0_26] : memref<256x1xf32, #tpu.memory_space<vmem>>, vector<256x1xf32>
      %51 = math.log %50 : vector<256x1xf32>
      %c0_27 = arith.constant 0 : index
      %c0_28 = arith.constant 0 : index
      %52 = vector.load %arg4[%c0_27, %c0_28] : memref<256x1xf32, #tpu.memory_space<vmem>>, vector<256x1xf32>
      %53 = arith.addf %51, %52 : vector<256x1xf32>
      %c256_i32_29 = arith.constant 256 : i32
      %54 = arith.muli %arg0, %c256_i32_29 : i32
      %55 = tpu.iota {dimensions = array<i32: 0>} : vector<256x1xi32>
      %56 = vector.broadcast %54 : i32 to vector<256x1xi32>
      %57 = arith.addi %56, %55 : vector<256x1xi32>
      %c256_i32_30 = arith.constant 256 : i32
      %58 = vector.broadcast %c256_i32_30 : i32 to vector<256x1xi32>
      %59 = arith.cmpi slt, %57, %58 : vector<256x1xi32>
      %c0_31 = arith.constant 0 : index
      %c0_32 = arith.constant 0 : index
      %60 = vector.load %arg6[%c0_31, %c0_32] : memref<256x1xf32, #tpu.memory_space<vmem>>, vector<256x1xf32>
      %61 = arith.subf %53, %60 : vector<256x1xf32>
      %cst_33 = arith.constant 0.000000e+00 : f32
      %62 = vector.broadcast %cst_33 : f32 to vector<256x1xf32>
      %63 = arith.select %59, %61, %62 : vector<256x1xi1>, vector<256x1xf32>
      %64 = vector.shape_cast %63 : vector<256x1xf32> to vector<1x256x1xf32>
      %cst_34 = arith.constant dense<0.000000e+00> : vector<1xf32>
      %65 = vector.multi_reduction <add>, %64, %cst_34 [1, 2] : vector<1x256x1xf32> to vector<1xf32>
      %66 = vector.shape_cast %65 : vector<1xf32> to vector<1x1x1xf32>
      %67 = vector.extract %66[0, 0, 0] : f32 from vector<1x1x1xf32>
      %68 = vector.broadcast %67 : f32 to vector<1x1x128xf32>
      %c0_35 = arith.constant 0 : index
      %c0_36 = arith.constant 0 : index
      %c0_37 = arith.constant 0 : index
      %69 = vector.load %arg3[%c0_35, %c0_36, %c0_37] : memref<1x1x128xf32, #tpu.memory_space<vmem>>, vector<1x1x128xf32>
      tpu.vector_store %arg3[%c0_35, %c0_36, %c0_37], %68 {strides = array<i32>} : memref<1x1x128xf32, #tpu.memory_space<vmem>>, vector<1x1x128xf32>,
    } else {
    }
    return
  }
  func.func @transform_0(%arg0: i32, %arg1: i32) -> (i32, i32) {
    %c0_i32 = arith.constant 0 : i32
    return %arg0, %arg1 : i32, i32
  }
  func.func @transform_1(%arg0: i32, %arg1: i32) -> (i32, i32, i32) {
    %c0_i32 = arith.constant 0 : i32
    %c0_i32_0 = arith.constant 0 : i32
    %c0_i32_1 = arith.constant 0 : i32
    return %arg0, %c0_i32, %c0_i32_0 : i32, i32, i32
  }
}

</mosaic_0001>

<llo_original>
// kernel: tpu_custom_call.1
$region0: #{tpu_custom_call.1}
  #allocation0 [shape = 'u32[]', space=smem, size = 0x4, offset = 0x4, fixed_abs, tag = 'smem constant byte address 0x4 - core index']
  #allocation1 [shape = 'u32[144,128]{1,0:T(1,128)}', space=vmem, size = 0x12000, scoped, tag = 'internal scratch']
  #allocation2 [shape = 'f32[256,1]{1,0:T(8,128)}', space=vmem, size = 0x20000, scoped, tag = 'scratch operand']
  #allocation3 [shape = 'f32[256,1]{1,0:T(8,128)}', space=vmem, size = 0x20000, scoped, tag = 'scratch operand']
  #allocation4 [shape = 'f32[256,1]{1,0:T(8,128)}', space=vmem, size = 0x20000, scoped, tag = 'scratch operand']
  %s0 = inlined_call_operand.hbm [shape: f32[256,256], index: 0, kind: input, shape index: {}]
  %s1 = inlined_call_operand.hbm [shape: f32[1,1,128], index: 1, kind: output, shape index: {}]
  %s2 = sld [smem:[#allocation0]]
  $region30: #{tpu_custom_call.1} parent=0
    _
  %s4 = ssub.s32 1, %s2
  %s5 = scalar_select 0, %s4, %s2
  $region1: #{tpu_custom_call.1} parent=0
    #allocation5 [shape = 'u8[262144]{0}', space=vmem, size = 0x40000, scoped, tag = 'input window, operand 0, single buffered']
    #allocation6 [shape = 's32[1]{0}', space=sflag, size = 0x4, scoped, tag = 'scoped memory for tpu_custom_call.1']
    #allocation7 [shape = 's32[1]{0}', space=sflag, size = 0x4, scoped, tag = 'scoped memory for tpu_custom_call.1']
    #allocation8 [shape = 'u8[512]{0}', space=vmem, size = 0x400, scoped, tag = 'output window, operand 0, single buffered']
    %6 = vsyncpa [#allocation6], 0
    %7 = vsyncpa [#allocation7], 0
    // Predicated region
    $region2: #{tpu_custom_call.1} parent=1 // pred_check
      _
    $region3: #{tpu_custom_call.1} parent=1 // pred_check_branch
      %9 = sbr.rel (0) target = $region5
    $region4: #{tpu_custom_call.1} parent=1 // pred_region
      %s11 = ssub.s32 8192, 8192
      %12 = vsyncadd [#allocation6], %s11
      %s13 = sshll.u32 [#allocation5], 4
      %s14 = int_to_ptr.vmem [resolvable:$true] %s13
      %19 = dma.hbm_to_vmem [thread:$0]  %s0, 8192, %s14, [#allocation6], 256, 256, 16
    $region5: #{tpu_custom_call.1} parent=1 // pred_fallthru
      _
    // Predicated region
    $region6: #{tpu_custom_call.1} parent=1 // pred_check
      _
    $region7: #{tpu_custom_call.1} parent=1 // pred_check_branch
      %21 = sbr.rel (0) target = $region9
    $region8: #{tpu_custom_call.1} parent=1 // pred_region
      %22 = dma.done [#allocation6], 8192
    $region9: #{tpu_custom_call.1} parent=1 // pred_fallthru
      _
    %p23 = scmp.eq.s32.totalorder 0, 0
    // Predicated region
    $region10: #{tpu_custom_call.1} parent=1 // pred_check
      %p24 = pneg %p23
    $region11: #{tpu_custom_call.1} parent=1 // pred_check_branch
      %26 = sbr.rel (%p24) target = $region13
    $region12: #{tpu_custom_call.1} parent=1 // pred_region
      %vm27 = vcmask 7168
      %28 = vst.msk [vmem:[#allocation2] sm:$0xff] %vm27, -inf
      %29 = vst.msk [vmem:[#allocation2 + $0x8] sm:$0xff] %vm27, -inf
      %30 = vst.msk [vmem:[#allocation2 + $0x10] sm:$0xff] %vm27, -inf
      %31 = vst.msk [vmem:[#allocation2 + $0x18] sm:$0xff] %vm27, -inf
      %32 = vst.msk [vmem:[#allocation2 + $0x20] sm:$0xff] %vm27, -inf
      %33 = vst.msk [vmem:[#allocation2 + $0x28] sm:$0xff] %vm27, -inf
      %34 = vst.msk [vmem:[#allocation2 + $0x30] sm:$0xff] %vm27, -inf
      %35 = vst.msk [vmem:[#allocation2 + $0x38] sm:$0xff] %vm27, -inf
      %36 = vst.msk [vmem:[#allocation2 + $0x40] sm:$0xff] %vm27, -inf
      %37 = vst.msk [vmem:[#allocation2 + $0x48] sm:$0xff] %vm27, -inf
      %38 = vst.msk [vmem:[#allocation2 + $0x50] sm:$0xff] %vm27, -inf
      %39 = vst.msk [vmem:[#allocation2 + $0x58] sm:$0xff] %vm27, -inf
      %40 = vst.msk [vmem:[#allocation2 + $0x60] sm:$0xff] %vm27, -inf
      %41 = vst.msk [vmem:[#allocation2 + $0x68] sm:$0xff] %vm27, -inf
      %42 = vst.msk [vmem:[#allocation2 + $0x70] sm:$0xff] %vm27, -inf
      %43 = vst.msk [vmem:[#allocation2 + $0x78] sm:$0xff] %vm27, -inf
      %44 = vst.msk [vmem:[#allocation2 + $0x80] sm:$0xff] %vm27, -inf
      %45 = vst.msk [vmem:[#allocation2 + $0x88] sm:$0xff] %vm27, -inf
      %46 = vst.msk [vmem:[#allocation2 + $0x90] sm:$0xff] %vm27, -inf
      %47 = vst.msk [vmem:[#allocation2 + $0x98] sm:$0xff] %vm27, -inf
      %48 = vst.msk [vmem:[#allocation2 + $0xa0] sm:$0xff] %vm27, -inf
      %49 = vst.msk [vmem:[#allocation2 + $0xa8] sm:$0xff] %vm27, -inf
      %50 = vst.msk [vmem:[#allocation2 + $0xb0] sm:$0xff] %vm27, -inf
      %51 = vst.msk [vmem:[#allocation2 + $0xb8] sm:$0xff] %vm27, -inf
      %52 = vst.msk [vmem:[#allocation2 + $0xc0] sm:$0xff] %vm27, -inf
      %53 = vst.msk [vmem:[#allocation2 + $0xc8] sm:$0xff] %vm27, -inf
      %54 = vst.msk [vmem:[#allocation2 + $0xd0] sm:$0xff] %vm27, -inf
      %55 = vst.msk [vmem:[#allocation2 + $0xd8] sm:$0xff] %vm27, -inf
      %56 = vst.msk [vmem:[#allocation2 + $0xe0] sm:$0xff] %vm27, -inf
      %57 = vst.msk [vmem:[#allocation2 + $0xe8] sm:$0xff] %vm27, -inf
      %58 = vst.msk [vmem:[#allocation2 + $0xf0] sm:$0xff] %vm27, -inf
      %59 = vst.msk [vmem:[#allocation2 + $0xf8] sm:$0xff] %vm27, -inf
      %60 = vst.msk [vmem:[#allocation3] sm:$0xff] %vm27, 0.0
      %61 = vst.msk [vmem:[#allocation3 + $0x8] sm:$0xff] %vm27, 0.0
      %62 = vst.msk [vmem:[#allocation3 + $0x10] sm:$0xff] %vm27, 0.0
      %63 = vst.msk [vmem:[#allocation3 + $0x18] sm:$0xff] %vm27, 0.0
      %64 = vst.msk [vmem:[#allocation3 + $0x20] sm:$0xff] %vm27, 0.0
      %65 = vst.msk [vmem:[#allocation3 + $0x28] sm:$0xff] %vm27, 0.0
      %66 = vst.msk [vmem:[#allocation3 + $0x30] sm:$0xff] %vm27, 0.0
      %67 = vst.msk [vmem:[#allocation3 + $0x38] sm:$0xff] %vm27, 0.0
      %68 = vst.msk [vmem:[#allocation3 + $0x40] sm:$0xff] %vm27, 0.0
      %69 = vst.msk [vmem:[#allocation3 + $0x48] sm:$0xff] %vm27, 0.0
      %70 = vst.msk [vmem:[#allocation3 + $0x50] sm:$0xff] %vm27, 0.0
      %71 = vst.msk [vmem:[#allocation3 + $0x58] sm:$0xff] %vm27, 0.0
      %72 = vst.msk [vmem:[#allocation3 + $0x60] sm:$0xff] %vm27, 0.0
      %73 = vst.msk [vmem:[#allocation3 + $0x68] sm:$0xff] %vm27, 0.0
      %74 = vst.msk [vmem:[#allocation3 + $0x70] sm:$0xff] %vm27, 0.0
      %75 = vst.msk [vmem:[#allocation3 + $0x78] sm:$0xff] %vm27, 0.0
      %76 = vst.msk [vmem:[#allocation3 + $0x80] sm:$0xff] %vm27, 0.0
      %77 = vst.msk [vmem:[#allocation3 + $0x88] sm:$0xff] %vm27, 0.0
      %78 = vst.msk [vmem:[#allocation3 + $0x90] sm:$0xff] %vm27, 0.0
      %79 = vst.msk [vmem:[#allocation3 + $0x98] sm:$0xff] %vm27, 0.0
      %80 = vst.msk [vmem:[#allocation3 + $0xa0] sm:$0xff] %vm27, 0.0
      %81 = vst.msk [vmem:[#allocation3 + $0xa8] sm:$0xff] %vm27, 0.0
      %82 = vst.msk [vmem:[#allocation3 + $0xb0] sm:$0xff] %vm27, 0.0
      %83 = vst.msk [vmem:[#allocation3 + $0xb8] sm:$0xff] %vm27, 0.0
      %84 = vst.msk [vmem:[#allocation3 + $0xc0] sm:$0xff] %vm27, 0.0
      %85 = vst.msk [vmem:[#allocation3 + $0xc8] sm:$0xff] %vm27, 0.0
      %86 = vst.msk [vmem:[#allocation3 + $0xd0] sm:$0xff] %vm27, 0.0
      %87 = vst.msk [vmem:[#allocation3 + $0xd8] sm:$0xff] %vm27, 0.0
      %88 = vst.msk [vmem:[#allocation3 + $0xe0] sm:$0xff] %vm27, 0.0
      %89 = vst.msk [vmem:[#allocation3 + $0xe8] sm:$0xff] %vm27, 0.0
      %90 = vst.msk [vmem:[#allocation3 + $0xf0] sm:$0xff] %vm27, 0.0
      %91 = vst.msk [vmem:[#allocation3 + $0xf8] sm:$0xff] %vm27, 0.0
      %92 = vst.msk [vmem:[#allocation4] sm:$0xff] %vm27, 0.0
      %93 = vst.msk [vmem:[#allocation4 + $0x8] sm:$0xff] %vm27, 0.0
      %94 = vst.msk [vmem:[#allocation4 + $0x10] sm:$0xff] %vm27, 0.0
      %95 = vst.msk [vmem:[#allocation4 + $0x18] sm:$0xff] %vm27, 0.0
      %96 = vst.msk [vmem:[#allocation4 + $0x20] sm:$0xff] %vm27, 0.0
      %97 = vst.msk [vmem:[#allocation4 + $0x28] sm:$0xff] %vm27, 0.0
      %98 = vst.msk [vmem:[#allocation4 + $0x30] sm:$0xff] %vm27, 0.0
      %99 = vst.msk [vmem:[#allocation4 + $0x38] sm:$0xff] %vm27, 0.0
      %100 = vst.msk [vmem:[#allocation4 + $0x40] sm:$0xff] %vm27, 0.0
      %101 = vst.msk [vmem:[#allocation4 + $0x48] sm:$0xff] %vm27, 0.0
      %102 = vst.msk [vmem:[#allocation4 + $0x50] sm:$0xff] %vm27, 0.0
      %103 = vst.msk [vmem:[#allocation4 + $0x58] sm:$0xff] %vm27, 0.0
      %104 = vst.msk [vmem:[#allocation4 + $0x60] sm:$0xff] %vm27, 0.0
      %105 = vst.msk [vmem:[#allocation4 + $0x68] sm:$0xff] %vm27, 0.0
      %106 = vst.msk [vmem:[#allocation4 + $0x70] sm:$0xff] %vm27, 0.0
      %107 = vst.msk [vmem:[#allocation4 + $0x78] sm:$0xff] %vm27, 0.0
      %108 = vst.msk [vmem:[#allocation4 + $0x80] sm:$0xff] %vm27, 0.0
      %109 = vst.msk [vmem:[#allocation4 + $0x88] sm:$0xff] %vm27, 0.0
      %110 = vst.msk [vmem:[#allocation4 + $0x90] sm:$0xff] %vm27, 0.0
      %111 = vst.msk [vmem:[#allocation4 + $0x98] sm:$0xff] %vm27, 0.0
      %112 = vst.msk [vmem:[#allocation4 + $0xa0] sm:$0xff] %vm27, 0.0
      %113 = vst.msk [vmem:[#allocation4 + $0xa8] sm:$0xff] %vm27, 0.0
      %114 = vst.msk [vmem:[#allocation4 + $0xb0] sm:$0xff] %vm27, 0.0
      %115 = vst.msk [vmem:[#allocation4 + $0xb8] sm:$0xff] %vm27, 0.0
      %116 = vst.msk [vmem:[#allocation4 + $0xc0] sm:$0xff] %vm27, 0.0
      %117 = vst.msk [vmem:[#allocation4 + $0xc8] sm:$0xff] %vm27, 0.0
      %118 = vst.msk [vmem:[#allocation4 + $0xd0] sm:$0xff] %vm27, 0.0
      %119 = vst.msk [vmem:[#allocation4 + $0xd8] sm:$0xff] %vm27, 0.0
      %120 = vst.msk [vmem:[#allocation4 + $0xe0] sm:$0xff] %vm27, 0.0
      %121 = vst.msk [vmem:[#allocation4 + $0xe8] sm:$0xff] %vm27, 0.0
      %122 = vst.msk [vmem:[#allocation4 + $0xf0] sm:$0xff] %vm27, 0.0
      %123 = vst.msk [vmem:[#allocation4 + $0xf8] sm:$0xff] %vm27, 0.0
    $region13: #{tpu_custom_call.1} parent=1 // pred_fallthru
      _
    %s124 = smul.u32 0, 256
    %v125 = vlaneseq
    %v126 = vshrl.u32 %v125, 7
    %v127 = vadd.s32 %v126, 8
    %v128 = vadd.s32 %v126, 16
    %v129 = vadd.s32 %v126, 24
    %v130 = vadd.s32 %v126, 32
    %v131 = vadd.s32 %v126, 40
    %v132 = vadd.s32 %v126, 48
    %v133 = vadd.s32 %v126, 56
    %v134 = vadd.s32 %v126, 64
    %v135 = vadd.s32 %v126, 72
    %v136 = vadd.s32 %v126, 80
    %v137 = vadd.s32 %v126, 88
    %v138 = vadd.s32 %v126, 96
    %v139 = vadd.s32 %v126, 104
    %v140 = vadd.s32 %v126, 112
    %v141 = vadd.s32 %v126, 120
    %v142 = vadd.s32 %v126, 128
    %v143 = vadd.s32 %v126, 136
    %v144 = vadd.s32 %v126, 144
    %v145 = vadd.s32 %v126, 152
    %v146 = vadd.s32 %v126, 160
    %v147 = vadd.s32 %v126, 168
    %v148 = vadd.s32 %v126, 176
    %v149 = vadd.s32 %v126, 184
    %v150 = vadd.s32 %v126, 192
    %v151 = vadd.s32 %v126, 200
    %v152 = vadd.s32 %v126, 208
    %v153 = vadd.s32 %v126, 216
    %v154 = vadd.s32 %v126, 224
    %v155 = vadd.s32 %v126, 232
    %v156 = vadd.s32 %v126, 240
    %v157 = vadd.s32 %v126, 248
    %v158 = vstv %s124
    %v159 = vadd.s32 %v158, %v126
    %v160 = vadd.s32 %v158, %v127
    %v161 = vadd.s32 %v158, %v128
    %v162 = vadd.s32 %v158, %v129
    %v163 = vadd.s32 %v158, %v130
    %v164 = vadd.s32 %v158, %v131
    %v165 = vadd.s32 %v158, %v132
    %v166 = vadd.s32 %v158, %v133
    %v167 = vadd.s32 %v158, %v134
    %v168 = vadd.s32 %v158, %v135
    %v169 = vadd.s32 %v158, %v136
    %v170 = vadd.s32 %v158, %v137
    %v171 = vadd.s32 %v158, %v138
    %v172 = vadd.s32 %v158, %v139
    %v173 = vadd.s32 %v158, %v140
    %v174 = vadd.s32 %v158, %v141
    %v175 = vadd.s32 %v158, %v142
    %v176 = vadd.s32 %v158, %v143
    %v177 = vadd.s32 %v158, %v144
    %v178 = vadd.s32 %v158, %v145
    %v179 = vadd.s32 %v158, %v146
    %v180 = vadd.s32 %v158, %v147
    %v181 = vadd.s32 %v158, %v148
    %v182 = vadd.s32 %v158, %v149
    %v183 = vadd.s32 %v158, %v150
    %v184 = vadd.s32 %v158, %v151
    %v185 = vadd.s32 %v158, %v152
    %v186 = vadd.s32 %v158, %v153
    %v187 = vadd.s32 %v158, %v154
    %v188 = vadd.s32 %v158, %v155
    %v189 = vadd.s32 %v158, %v156
    %v190 = vadd.s32 %v158, %v157
    %s191 = smul.u32 0, 256
    %v192 = vlaneseq
    %v193 = vand.u32 %v192, 127
    %v194 = vadd.s32 %v193, 128
    %v195 = vstv %s191
    %v196 = vadd.s32 %v195, %v193
    %v197 = vadd.s32 %v195, %v194
    %vm198 = vcmp.lt.s32.totalorder %v159, 256
    %vm199 = vcmp.lt.s32.totalorder %v160, 256
    %vm200 = vcmp.lt.s32.totalorder %v161, 256
    %vm201 = vcmp.lt.s32.totalorder %v162, 256
    %vm202 = vcmp.lt.s32.totalorder %v163, 256
    %vm203 = vcmp.lt.s32.totalorder %v164, 256
    %vm204 = vcmp.lt.s32.totalorder %v165, 256
    %vm205 = vcmp.lt.s32.totalorder %v166, 256
    %vm206 = vcmp.lt.s32.totalorder %v167, 256
    %vm207 = vcmp.lt.s32.totalorder %v168, 256
    %vm208 = vcmp.lt.s32.totalorder %v169, 256
    %vm209 = vcmp.lt.s32.totalorder %v170, 256
    %vm210 = vcmp.lt.s32.totalorder %v171, 256
    %vm211 = vcmp.lt.s32.totalorder %v172, 256
    %vm212 = vcmp.lt.s32.totalorder %v173, 256
    %vm213 = vcmp.lt.s32.totalorder %v174, 256
    %vm214 = vcmp.lt.s32.totalorder %v175, 256
    %vm215 = vcmp.lt.s32.totalorder %v176, 256
    %vm216 = vcmp.lt.s32.totalorder %v177, 256
    %vm217 = vcmp.lt.s32.totalorder %v178, 256
    %vm218 = vcmp.lt.s32.totalorder %v179, 256
    %vm219 = vcmp.lt.s32.totalorder %v180, 256
    %vm220 = vcmp.lt.s32.totalorder %v181, 256
    %vm221 = vcmp.lt.s32.totalorder %v182, 256
    %vm222 = vcmp.lt.s32.totalorder %v183, 256
    %vm223 = vcmp.lt.s32.totalorder %v184, 256
    %vm224 = vcmp.lt.s32.totalorder %v185, 256
    %vm225 = vcmp.lt.s32.totalorder %v186, 256
    %vm226 = vcmp.lt.s32.totalorder %v187, 256
    %vm227 = vcmp.lt.s32.totalorder %v188, 256
    %vm228 = vcmp.lt.s32.totalorder %v189, 256
    %vm229 = vcmp.lt.s32.totalorder %v190, 256
    %vm230 = vcmp.lt.s32.totalorder %v196, 256
    %vm231 = vcmp.lt.s32.totalorder %v197, 256
    %vm232 = vmand %vm198, %vm230
    %vm233 = vmand %vm198, %vm231
    %vm234 = vmand %vm199, %vm230
    %vm235 = vmand %vm199, %vm231
    %vm236 = vmand %vm200, %vm230
    %vm237 = vmand %vm200, %vm231
    %vm238 = vmand %vm201, %vm230
    %vm239 = vmand %vm201, %vm231
    %vm240 = vmand %vm202, %vm230
    %vm241 = vmand %vm202, %vm231
    %vm242 = vmand %vm203, %vm230
    %vm243 = vmand %vm203, %vm231
    %vm244 = vmand %vm204, %vm230
    %vm245 = vmand %vm204, %vm231
    %vm246 = vmand %vm205, %vm230
    %vm247 = vmand %vm205, %vm231
    %vm248 = vmand %vm206, %vm230
    %vm249 = vmand %vm206, %vm231
    %vm250 = vmand %vm207, %vm230
    %vm251 = vmand %vm207, %vm231
    %vm252 = vmand %vm208, %vm230
    %vm253 = vmand %vm208, %vm231
    %vm254 = vmand %vm209, %vm230
    %vm255 = vmand %vm209, %vm231
    %vm256 = vmand %vm210, %vm230
    %vm257 = vmand %vm210, %vm231
    %vm258 = vmand %vm211, %vm230
    %vm259 = vmand %vm211, %vm231
    %vm260 = vmand %vm212, %vm230
    %vm261 = vmand %vm212, %vm231
    %vm262 = vmand %vm213, %vm230
    %vm263 = vmand %vm213, %vm231
    %vm264 = vmand %vm214, %vm230
    %vm265 = vmand %vm214, %vm231
    %vm266 = vmand %vm215, %vm230
    %vm267 = vmand %vm215, %vm231
    %vm268 = vmand %vm216, %vm230
    %vm269 = vmand %vm216, %vm231
    %vm270 = vmand %vm217, %vm230
    %vm271 = vmand %vm217, %vm231
    %vm272 = vmand %vm218, %vm230
    %vm273 = vmand %vm218, %vm231
    %vm274 = vmand %vm219, %vm230
    %vm275 = vmand %vm219, %vm231
    %vm276 = vmand %vm220, %vm230
    %vm277 = vmand %vm220, %vm231
    %vm278 = vmand %vm221, %vm230
    %vm279 = vmand %vm221, %vm231
    %vm280 = vmand %vm222, %vm230
    %vm281 = vmand %vm222, %vm231
    %vm282 = vmand %vm223, %vm230
    %vm283 = vmand %vm223, %vm231
    %vm284 = vmand %vm224, %vm230
    %vm285 = vmand %vm224, %vm231
    %vm286 = vmand %vm225, %vm230
    %vm287 = vmand %vm225, %vm231
    %vm288 = vmand %vm226, %vm230
    %vm289 = vmand %vm226, %vm231
    %vm290 = vmand %vm227, %vm230
    %vm291 = vmand %vm227, %vm231
    %vm292 = vmand %vm228, %vm230
    %vm293 = vmand %vm228, %vm231
    %vm294 = vmand %vm229, %vm230
    %vm295 = vmand %vm229, %vm231
    %v296 = vld [vmem:[#allocation5] sm:$0xff]
    %v297 = vld [vmem:[#allocation5 + $0x8] sm:$0xff]
    %v298 = vld [vmem:[#allocation5 + $0x10] sm:$0xff]
    %v299 = vld [vmem:[#allocation5 + $0x18] sm:$0xff]
    %v300 = vld [vmem:[#allocation5 + $0x20] sm:$0xff]
    %v301 = vld [vmem:[#allocation5 + $0x28] sm:$0xff]
    %v302 = vld [vmem:[#allocation5 + $0x30] sm:$0xff]
    %v303 = vld [vmem:[#allocation5 + $0x38] sm:$0xff]
    %v304 = vld [vmem:[#allocation5 + $0x40] sm:$0xff]
    %v305 = vld [vmem:[#allocation5 + $0x48] sm:$0xff]
    %v306 = vld [vmem:[#allocation5 + $0x50] sm:$0xff]
    %v307 = vld [vmem:[#allocation5 + $0x58] sm:$0xff]
    %v308 = vld [vmem:[#allocation5 + $0x60] sm:$0xff]
    %v309 = vld [vmem:[#allocation5 + $0x68] sm:$0xff]
    %v310 = vld [vmem:[#allocation5 + $0x70] sm:$0xff]
    %v311 = vld [vmem:[#allocation5 + $0x78] sm:$0xff]
    %v312 = vld [vmem:[#allocation5 + $0x80] sm:$0xff]
    %v313 = vld [vmem:[#allocation5 + $0x88] sm:$0xff]
    %v314 = vld [vmem:[#allocation5 + $0x90] sm:$0xff]
    %v315 = vld [vmem:[#allocation5 + $0x98] sm:$0xff]
    %v316 = vld [vmem:[#allocation5 + $0xa0] sm:$0xff]
    %v317 = vld [vmem:[#allocation5 + $0xa8] sm:$0xff]
    %v318 = vld [vmem:[#allocation5 + $0xb0] sm:$0xff]
    %v319 = vld [vmem:[#allocation5 + $0xb8] sm:$0xff]
    %v320 = vld [vmem:[#allocation5 + $0xc0] sm:$0xff]
    %v321 = vld [vmem:[#allocation5 + $0xc8] sm:$0xff]
    %v322 = vld [vmem:[#allocation5 + $0xd0] sm:$0xff]
    %v323 = vld [vmem:[#allocation5 + $0xd8] sm:$0xff]
    %v324 = vld [vmem:[#allocation5 + $0xe0] sm:$0xff]
    %v325 = vld [vmem:[#allocation5 + $0xe8] sm:$0xff]
    %v326 = vld [vmem:[#allocation5 + $0xf0] sm:$0xff]
    %v327 = vld [vmem:[#allocation5 + $0xf8] sm:$0xff]
    %v328 = vld [vmem:[#allocation5 + $0x100] sm:$0xff]
    %v329 = vld [vmem:[#allocation5 + $0x108] sm:$0xff]
    %v330 = vld [vmem:[#allocation5 + $0x110] sm:$0xff]
    %v331 = vld [vmem:[#allocation5 + $0x118] sm:$0xff]
    %v332 = vld [vmem:[#allocation5 + $0x120] sm:$0xff]
    %v333 = vld [vmem:[#allocation5 + $0x128] sm:$0xff]
    %v334 = vld [vmem:[#allocation5 + $0x130] sm:$0xff]
    %v335 = vld [vmem:[#allocation5 + $0x138] sm:$0xff]
    %v336 = vld [vmem:[#allocation5 + $0x140] sm:$0xff]
    %v337 = vld [vmem:[#allocation5 + $0x148] sm:$0xff]
    %v338 = vld [vmem:[#allocation5 + $0x150] sm:$0xff]
    %v339 = vld [vmem:[#allocation5 + $0x158] sm:$0xff]
    %v340 = vld [vmem:[#allocation5 + $0x160] sm:$0xff]
    %v341 = vld [vmem:[#allocation5 + $0x168] sm:$0xff]
    %v342 = vld [vmem:[#allocation5 + $0x170] sm:$0xff]
    %v343 = vld [vmem:[#allocation5 + $0x178] sm:$0xff]
    %v344 = vld [vmem:[#allocation5 + $0x180] sm:$0xff]
    %v345 = vld [vmem:[#allocation5 + $0x188] sm:$0xff]
    %v346 = vld [vmem:[#allocation5 + $0x190] sm:$0xff]
    %v347 = vld [vmem:[#allocation5 + $0x198] sm:$0xff]
    %v348 = vld [vmem:[#allocation5 + $0x1a0] sm:$0xff]
    %v349 = vld [vmem:[#allocation5 + $0x1a8] sm:$0xff]
    %v350 = vld [vmem:[#allocation5 + $0x1b0] sm:$0xff]
    %v351 = vld [vmem:[#allocation5 + $0x1b8] sm:$0xff]
    %v352 = vld [vmem:[#allocation5 + $0x1c0] sm:$0xff]
    %v353 = vld [vmem:[#allocation5 + $0x1c8] sm:$0xff]
    %v354 = vld [vmem:[#allocation5 + $0x1d0] sm:$0xff]
    %v355 = vld [vmem:[#allocation5 + $0x1d8] sm:$0xff]
    %v356 = vld [vmem:[#allocation5 + $0x1e0] sm:$0xff]
    %v357 = vld [vmem:[#allocation5 + $0x1e8] sm:$0xff]
    %v358 = vld [vmem:[#allocation5 + $0x1f0] sm:$0xff]
    %v359 = vld [vmem:[#allocation5 + $0x1f8] sm:$0xff]
    %v360 = vsel %vm232, %v296, -1e+30
    %v361 = vsel %vm233, %v297, -1e+30
    %v362 = vsel %vm234, %v298, -1e+30
    %v363 = vsel %vm235, %v299, -1e+30
    %v364 = vsel %vm236, %v300, -1e+30
    %v365 = vsel %vm237, %v301, -1e+30
    %v366 = vsel %vm238, %v302, -1e+30
    %v367 = vsel %vm239, %v303, -1e+30
    %v368 = vsel %vm240, %v304, -1e+30
    %v369 = vsel %vm241, %v305, -1e+30
    %v370 = vsel %vm242, %v306, -1e+30
    %v371 = vsel %vm243, %v307, -1e+30
    %v372 = vsel %vm244, %v308, -1e+30
    %v373 = vsel %vm245, %v309, -1e+30
    %v374 = vsel %vm246, %v310, -1e+30
    %v375 = vsel %vm247, %v311, -1e+30
    %v376 = vsel %vm248, %v312, -1e+30
    %v377 = vsel %vm249, %v313, -1e+30
    %v378 = vsel %vm250, %v314, -1e+30
    %v379 = vsel %vm251, %v315, -1e+30
    %v380 = vsel %vm252, %v316, -1e+30
    %v381 = vsel %vm253, %v317, -1e+30
    %v382 = vsel %vm254, %v318, -1e+30
    %v383 = vsel %vm255, %v319, -1e+30
    %v384 = vsel %vm256, %v320, -1e+30
    %v385 = vsel %vm257, %v321, -1e+30
    %v386 = vsel %vm258, %v322, -1e+30
    %v387 = vsel %vm259, %v323, -1e+30
    %v388 = vsel %vm260, %v324, -1e+30
    %v389 = vsel %vm261, %v325, -1e+30
    %v390 = vsel %vm262, %v326, -1e+30
    %v391 = vsel %vm263, %v327, -1e+30
    %v392 = vsel %vm264, %v328, -1e+30
    %v393 = vsel %vm265, %v329, -1e+30
    %v394 = vsel %vm266, %v330, -1e+30
    %v395 = vsel %vm267, %v331, -1e+30
    %v396 = vsel %vm268, %v332, -1e+30
    %v397 = vsel %vm269, %v333, -1e+30
    %v398 = vsel %vm270, %v334, -1e+30
    %v399 = vsel %vm271, %v335, -1e+30
    %v400 = vsel %vm272, %v336, -1e+30
    %v401 = vsel %vm273, %v337, -1e+30
    %v402 = vsel %vm274, %v338, -1e+30
    %v403 = vsel %vm275, %v339, -1e+30
    %v404 = vsel %vm276, %v340, -1e+30
    %v405 = vsel %vm277, %v341, -1e+30
    %v406 = vsel %vm278, %v342, -1e+30
    %v407 = vsel %vm279, %v343, -1e+30
    %v408 = vsel %vm280, %v344, -1e+30
    %v409 = vsel %vm281, %v345, -1e+30
    %v410 = vsel %vm282, %v346, -1e+30
    %v411 = vsel %vm283, %v347, -1e+30
    %v412 = vsel %vm284, %v348, -1e+30
    %v413 = vsel %vm285, %v349, -1e+30
    %v414 = vsel %vm286, %v350, -1e+30
    %v415 = vsel %vm287, %v351, -1e+30
    %v416 = vsel %vm288, %v352, -1e+30
    %v417 = vsel %vm289, %v353, -1e+30
    %v418 = vsel %vm290, %v354, -1e+30
    %v419 = vsel %vm291, %v355, -1e+30
    %v420 = vsel %vm292, %v356, -1e+30
    %v421 = vsel %vm293, %v357, -1e+30
    %v422 = vsel %vm294, %v358, -1e+30
    %v423 = vsel %vm295, %v359, -1e+30
    %v424 = vmax.f32 %v360, %v361
    %425 = vmax.xlane.f32.xlu0 %v424
    %v426 = vpop.xlane.xlu0 %425
    %v427 = vmax.f32 %v362, %v363
    %428 = vmax.xlane.f32.xlu0 %v427
    %v429 = vpop.xlane.xlu0 %428
    %v430 = vmax.f32 %v364, %v365
    %431 = vmax.xlane.f32.xlu0 %v430
    %v432 = vpop.xlane.xlu0 %431
    %v433 = vmax.f32 %v366, %v367
    %434 = vmax.xlane.f32.xlu0 %v433
    %v435 = vpop.xlane.xlu0 %434
    %v436 = vmax.f32 %v368, %v369
    %437 = vmax.xlane.f32.xlu0 %v436
    %v438 = vpop.xlane.xlu0 %437
    %v439 = vmax.f32 %v370, %v371
    %440 = vmax.xlane.f32.xlu0 %v439
    %v441 = vpop.xlane.xlu0 %440
    %v442 = vmax.f32 %v372, %v373
    %443 = vmax.xlane.f32.xlu0 %v442
    %v444 = vpop.xlane.xlu0 %443
    %v445 = vmax.f32 %v374, %v375
    %446 = vmax.xlane.f32.xlu0 %v445
    %v447 = vpop.xlane.xlu0 %446
    %v448 = vmax.f32 %v376, %v377
    %449 = vmax.xlane.f32.xlu0 %v448
    %v450 = vpop.xlane.xlu0 %449
    %v451 = vmax.f32 %v378, %v379
    %452 = vmax.xlane.f32.xlu0 %v451
    %v453 = vpop.xlane.xlu0 %452
    %v454 = vmax.f32 %v380, %v381
    %455 = vmax.xlane.f32.xlu0 %v454
    %v456 = vpop.xlane.xlu0 %455
    %v457 = vmax.f32 %v382, %v383
    %458 = vmax.xlane.f32.xlu0 %v457
    %v459 = vpop.xlane.xlu0 %458
    %v460 = vmax.f32 %v384, %v385
    %461 = vmax.xlane.f32.xlu0 %v460
    %v462 = vpop.xlane.xlu0 %461
    %v463 = vmax.f32 %v386, %v387
    %464 = vmax.xlane.f32.xlu0 %v463
    %v465 = vpop.xlane.xlu0 %464
    %v466 = vmax.f32 %v388, %v389
    %467 = vmax.xlane.f32.xlu0 %v466
    %v468 = vpop.xlane.xlu0 %467
    %v469 = vmax.f32 %v390, %v391
    %470 = vmax.xlane.f32.xlu0 %v469
    %v471 = vpop.xlane.xlu0 %470
    %v472 = vmax.f32 %v392, %v393
    %473 = vmax.xlane.f32.xlu0 %v472
    %v474 = vpop.xlane.xlu0 %473
    %v475 = vmax.f32 %v394, %v395
    %476 = vmax.xlane.f32.xlu0 %v475
    %v477 = vpop.xlane.xlu0 %476
    %v478 = vmax.f32 %v396, %v397
    %479 = vmax.xlane.f32.xlu0 %v478
    %v480 = vpop.xlane.xlu0 %479
    %v481 = vmax.f32 %v398, %v399
    %482 = vmax.xlane.f32.xlu0 %v481
    %v483 = vpop.xlane.xlu0 %482
    %v484 = vmax.f32 %v400, %v401
    %485 = vmax.xlane.f32.xlu0 %v484
    %v486 = vpop.xlane.xlu0 %485
    %v487 = vmax.f32 %v402, %v403
    %488 = vmax.xlane.f32.xlu0 %v487
    %v489 = vpop.xlane.xlu0 %488
    %v490 = vmax.f32 %v404, %v405
    %491 = vmax.xlane.f32.xlu0 %v490
    %v492 = vpop.xlane.xlu0 %491
    %v493 = vmax.f32 %v406, %v407
    %494 = vmax.xlane.f32.xlu0 %v493
    %v495 = vpop.xlane.xlu0 %494
    %v496 = vmax.f32 %v408, %v409
    %497 = vmax.xlane.f32.xlu0 %v496
    %v498 = vpop.xlane.xlu0 %497
    %v499 = vmax.f32 %v410, %v411
    %500 = vmax.xlane.f32.xlu0 %v499
    %v501 = vpop.xlane.xlu0 %500
    %v502 = vmax.f32 %v412, %v413
    %503 = vmax.xlane.f32.xlu0 %v502
    %v504 = vpop.xlane.xlu0 %503
    %v505 = vmax.f32 %v414, %v415
    %506 = vmax.xlane.f32.xlu0 %v505
    %v507 = vpop.xlane.xlu0 %506
    %v508 = vmax.f32 %v416, %v417
    %509 = vmax.xlane.f32.xlu0 %v508
    %v510 = vpop.xlane.xlu0 %509
    %v511 = vmax.f32 %v418, %v419
    %512 = vmax.xlane.f32.xlu0 %v511
    %v513 = vpop.xlane.xlu0 %512
    %v514 = vmax.f32 %v420, %v421
    %515 = vmax.xlane.f32.xlu0 %v514
    %v516 = vpop.xlane.xlu0 %515
    %v517 = vmax.f32 %v422, %v423
    %518 = vmax.xlane.f32.xlu0 %v517
    %v519 = vpop.xlane.xlu0 %518
    %v520 = vld [vmem:[#allocation2] sm:$0xff]
    %v521 = vld [vmem:[#allocation2 + $0x8] sm:$0xff]
    %v522 = vld [vmem:[#allocation2 + $0x10] sm:$0xff]
    %v523 = vld [vmem:[#allocation2 + $0x18] sm:$0xff]
    %v524 = vld [vmem:[#allocation2 + $0x20] sm:$0xff]
    %v525 = vld [vmem:[#allocation2 + $0x28] sm:$0xff]
    %v526 = vld [vmem:[#allocation2 + $0x30] sm:$0xff]
    %v527 = vld [vmem:[#allocation2 + $0x38] sm:$0xff]
    %v528 = vld [vmem:[#allocation2 + $0x40] sm:$0xff]
    %v529 = vld [vmem:[#allocation2 + $0x48] sm:$0xff]
    %v530 = vld [vmem:[#allocation2 + $0x50] sm:$0xff]
    %v531 = vld [vmem:[#allocation2 + $0x58] sm:$0xff]
    %v532 = vld [vmem:[#allocation2 + $0x60] sm:$0xff]
    %v533 = vld [vmem:[#allocation2 + $0x68] sm:$0xff]
    %v534 = vld [vmem:[#allocation2 + $0x70] sm:$0xff]
    %v535 = vld [vmem:[#allocation2 + $0x78] sm:$0xff]
    %v536 = vld [vmem:[#allocation2 + $0x80] sm:$0xff]
    %v537 = vld [vmem:[#allocation2 + $0x88] sm:$0xff]
    %v538 = vld [vmem:[#allocation2 + $0x90] sm:$0xff]
    %v539 = vld [vmem:[#allocation2 + $0x98] sm:$0xff]
    %v540 = vld [vmem:[#allocation2 + $0xa0] sm:$0xff]
    %v541 = vld [vmem:[#allocation2 + $0xa8] sm:$0xff]
    %v542 = vld [vmem:[#allocation2 + $0xb0] sm:$0xff]
    %v543 = vld [vmem:[#allocation2 + $0xb8] sm:$0xff]
    %v544 = vld [vmem:[#allocation2 + $0xc0] sm:$0xff]
    %v545 = vld [vmem:[#allocation2 + $0xc8] sm:$0xff]
    %v546 = vld [vmem:[#allocation2 + $0xd0] sm:$0xff]
    %v547 = vld [vmem:[#allocation2 + $0xd8] sm:$0xff]
    %v548 = vld [vmem:[#allocation2 + $0xe0] sm:$0xff]
    %v549 = vld [vmem:[#allocation2 + $0xe8] sm:$0xff]
    %v550 = vld [vmem:[#allocation2 + $0xf0] sm:$0xff]
    %v551 = vld [vmem:[#allocation2 + $0xf8] sm:$0xff]
    %v552 = vmax.f32 %v520, %v426
    %v553 = vmax.f32 %v521, %v429
    %v554 = vmax.f32 %v522, %v432
    %v555 = vmax.f32 %v523, %v435
    %v556 = vmax.f32 %v524, %v438
    %v557 = vmax.f32 %v525, %v441
    %v558 = vmax.f32 %v526, %v444
    %v559 = vmax.f32 %v527, %v447
    %v560 = vmax.f32 %v528, %v450
    %v561 = vmax.f32 %v529, %v453
    %v562 = vmax.f32 %v530, %v456
    %v563 = vmax.f32 %v531, %v459
    %v564 = vmax.f32 %v532, %v462
    %v565 = vmax.f32 %v533, %v465
    %v566 = vmax.f32 %v534, %v468
    %v567 = vmax.f32 %v535, %v471
    %v568 = vmax.f32 %v536, %v474
    %v569 = vmax.f32 %v537, %v477
    %v570 = vmax.f32 %v538, %v480
    %v571 = vmax.f32 %v539, %v483
    %v572 = vmax.f32 %v540, %v486
    %v573 = vmax.f32 %v541, %v489
    %v574 = vmax.f32 %v542, %v492
    %v575 = vmax.f32 %v543, %v495
    %v576 = vmax.f32 %v544, %v498
    %v577 = vmax.f32 %v545, %v501
    %v578 = vmax.f32 %v546, %v504
    %v579 = vmax.f32 %v547, %v507
    %v580 = vmax.f32 %v548, %v510
    %v581 = vmax.f32 %v549, %v513
    %v582 = vmax.f32 %v550, %v516
    %v583 = vmax.f32 %v551, %v519
    %v584 = vsub.f32 %v520, %v552
    %v585 = vsub.f32 %v521, %v553
    %v586 = vsub.f32 %v522, %v554
    %v587 = vsub.f32 %v523, %v555
    %v588 = vsub.f32 %v524, %v556
    %v589 = vsub.f32 %v525, %v557
    %v590 = vsub.f32 %v526, %v558
    %v591 = vsub.f32 %v527, %v559
    %v592 = vsub.f32 %v528, %v560
    %v593 = vsub.f32 %v529, %v561
    %v594 = vsub.f32 %v530, %v562
    %v595 = vsub.f32 %v531, %v563
    %v596 = vsub.f32 %v532, %v564
    %v597 = vsub.f32 %v533, %v565
    %v598 = vsub.f32 %v534, %v566
    %v599 = vsub.f32 %v535, %v567
    %v600 = vsub.f32 %v536, %v568
    %v601 = vsub.f32 %v537, %v569
    %v602 = vsub.f32 %v538, %v570
    %v603 = vsub.f32 %v539, %v571
    %v604 = vsub.f32 %v540, %v572
    %v605 = vsub.f32 %v541, %v573
    %v606 = vsub.f32 %v542, %v574
    %v607 = vsub.f32 %v543, %v575
    %v608 = vsub.f32 %v544, %v576
    %v609 = vsub.f32 %v545, %v577
    %v610 = vsub.f32 %v546, %v578
    %v611 = vsub.f32 %v547, %v579
    %v612 = vsub.f32 %v548, %v580
    %v613 = vsub.f32 %v549, %v581
    %v614 = vsub.f32 %v550, %v582
    %v615 = vsub.f32 %v551, %v583
    %v616 = vmul.f32 %v584, 1.442695
    %v617 = vpow.pop %v616
    %v618 = vmul.f32 %v585, 1.442695
    %v619 = vpow.pop %v618
    %v620 = vmul.f32 %v586, 1.442695
    %v621 = vpow.pop %v620
    %v622 = vmul.f32 %v587, 1.442695
    %v623 = vpow.pop %v622
    %v624 = vmul.f32 %v588, 1.442695
    %v625 = vpow.pop %v624
    %v626 = vmul.f32 %v589, 1.442695
    %v627 = vpow.pop %v626
    %v628 = vmul.f32 %v590, 1.442695
    %v629 = vpow.pop %v628
    %v630 = vmul.f32 %v591, 1.442695
    %v631 = vpow.pop %v630
    %v632 = vmul.f32 %v592, 1.442695
    %v633 = vpow.pop %v632
    %v634 = vmul.f32 %v593, 1.442695
    %v635 = vpow.pop %v634
    %v636 = vmul.f32 %v594, 1.442695
    %v637 = vpow.pop %v636
    %v638 = vmul.f32 %v595, 1.442695
    %v639 = vpow.pop %v638
    %v640 = vmul.f32 %v596, 1.442695
    %v641 = vpow.pop %v640
    %v642 = vmul.f32 %v597, 1.442695
    %v643 = vpow.pop %v642
    %v644 = vmul.f32 %v598, 1.442695
    %v645 = vpow.pop %v644
    %v646 = vmul.f32 %v599, 1.442695
    %v647 = vpow.pop %v646
    %v648 = vmul.f32 %v600, 1.442695
    %v649 = vpow.pop %v648
    %v650 = vmul.f32 %v601, 1.442695
    %v651 = vpow.pop %v650
    %v652 = vmul.f32 %v602, 1.442695
    %v653 = vpow.pop %v652
    %v654 = vmul.f32 %v603, 1.442695
    %v655 = vpow.pop %v654
    %v656 = vmul.f32 %v604, 1.442695
    %v657 = vpow.pop %v656
    %v658 = vmul.f32 %v605, 1.442695
    %v659 = vpow.pop %v658
    %v660 = vmul.f32 %v606, 1.442695
    %v661 = vpow.pop %v660
    %v662 = vmul.f32 %v607, 1.442695
    %v663 = vpow.pop %v662
    %v664 = vmul.f32 %v608, 1.442695
    %v665 = vpow.pop %v664
    %v666 = vmul.f32 %v609, 1.442695
    %v667 = vpow.pop %v666
    %v668 = vmul.f32 %v610, 1.442695
    %v669 = vpow.pop %v668
    %v670 = vmul.f32 %v611, 1.442695
    %v671 = vpow.pop %v670
    %v672 = vmul.f32 %v612, 1.442695
    %v673 = vpow.pop %v672
    %v674 = vmul.f32 %v613, 1.442695
    %v675 = vpow.pop %v674
    %v676 = vmul.f32 %v614, 1.442695
    %v677 = vpow.pop %v676
    %v678 = vmul.f32 %v615, 1.442695
    %v679 = vpow.pop %v678
    %v680 = vld [vmem:[#allocation3] sm:$0xff]
    %v681 = vld [vmem:[#allocation3 + $0x8] sm:$0xff]
    %v682 = vld [vmem:[#allocation3 + $0x10] sm:$0xff]
    %v683 = vld [vmem:[#allocation3 + $0x18] sm:$0xff]
    %v684 = vld [vmem:[#allocation3 + $0x20] sm:$0xff]
    %v685 = vld [vmem:[#allocation3 + $0x28] sm:$0xff]
    %v686 = vld [vmem:[#allocation3 + $0x30] sm:$0xff]
    %v687 = vld [vmem:[#allocation3 + $0x38] sm:$0xff]
    %v688 = vld [vmem:[#allocation3 + $0x40] sm:$0xff]
    %v689 = vld [vmem:[#allocation3 + $0x48] sm:$0xff]
    %v690 = vld [vmem:[#allocation3 + $0x50] sm:$0xff]
    %v691 = vld [vmem:[#allocation3 + $0x58] sm:$0xff]
    %v692 = vld [vmem:[#allocation3 + $0x60] sm:$0xff]
    %v693 = vld [vmem:[#allocation3 + $0x68] sm:$0xff]
    %v694 = vld [vmem:[#allocation3 + $0x70] sm:$0xff]
    %v695 = vld [vmem:[#allocation3 + $0x78] sm:$0xff]
    %v696 = vld [vmem:[#allocation3 + $0x80] sm:$0xff]
    %v697 = vld [vmem:[#allocation3 + $0x88] sm:$0xff]
    %v698 = vld [vmem:[#allocation3 + $0x90] sm:$0xff]
    %v699 = vld [vmem:[#allocation3 + $0x98] sm:$0xff]
    %v700 = vld [vmem:[#allocation3 + $0xa0] sm:$0xff]
    %v701 = vld [vmem:[#allocation3 + $0xa8] sm:$0xff]
    %v702 = vld [vmem:[#allocation3 + $0xb0] sm:$0xff]
    %v703 = vld [vmem:[#allocation3 + $0xb8] sm:$0xff]
    %v704 = vld [vmem:[#allocation3 + $0xc0] sm:$0xff]
    %v705 = vld [vmem:[#allocation3 + $0xc8] sm:$0xff]
    %v706 = vld [vmem:[#allocation3 + $0xd0] sm:$0xff]
    %v707 = vld [vmem:[#allocation3 + $0xd8] sm:$0xff]
    %v708 = vld [vmem:[#allocation3 + $0xe0] sm:$0xff]
    %v709 = vld [vmem:[#allocation3 + $0xe8] sm:$0xff]
    %v710 = vld [vmem:[#allocation3 + $0xf0] sm:$0xff]
    %v711 = vld [vmem:[#allocation3 + $0xf8] sm:$0xff]
    %v712 = vmul.f32 %v617, %v680
    %v713 = vmul.f32 %v619, %v681
    %v714 = vmul.f32 %v621, %v682
    %v715 = vmul.f32 %v623, %v683
    %v716 = vmul.f32 %v625, %v684
    %v717 = vmul.f32 %v627, %v685
    %v718 = vmul.f32 %v629, %v686
    %v719 = vmul.f32 %v631, %v687
    %v720 = vmul.f32 %v633, %v688
    %v721 = vmul.f32 %v635, %v689
    %v722 = vmul.f32 %v637, %v690
    %v723 = vmul.f32 %v639, %v691
    %v724 = vmul.f32 %v641, %v692
    %v725 = vmul.f32 %v643, %v693
    %v726 = vmul.f32 %v645, %v694
    %v727 = vmul.f32 %v647, %v695
    %v728 = vmul.f32 %v649, %v696
    %v729 = vmul.f32 %v651, %v697
    %v730 = vmul.f32 %v653, %v698
    %v731 = vmul.f32 %v655, %v699
    %v732 = vmul.f32 %v657, %v700
    %v733 = vmul.f32 %v659, %v701
    %v734 = vmul.f32 %v661, %v702
    %v735 = vmul.f32 %v663, %v703
    %v736 = vmul.f32 %v665, %v704
    %v737 = vmul.f32 %v667, %v705
    %v738 = vmul.f32 %v669, %v706
    %v739 = vmul.f32 %v671, %v707
    %v740 = vmul.f32 %v673, %v708
    %v741 = vmul.f32 %v675, %v709
    %v742 = vmul.f32 %v677, %v710
    %v743 = vmul.f32 %v679, %v711
    %745 = vset.pattern.permute.xlu0 0
    %746 = vperm.xlu0 %745, %v552
    %v747 = vpop.permute.xlu0 %746
    %750 = vset.pattern.permute.xlu0 0
    %751 = vperm.xlu0 %750, %v553
    %v752 = vpop.permute.xlu0 %751
    %755 = vset.pattern.permute.xlu0 0
    %756 = vperm.xlu0 %755, %v554
    %v757 = vpop.permute.xlu0 %756
    %760 = vset.pattern.permute.xlu0 0
    %761 = vperm.xlu0 %760, %v555
    %v762 = vpop.permute.xlu0 %761
    %765 = vset.pattern.permute.xlu0 0
    %766 = vperm.xlu0 %765, %v556
    %v767 = vpop.permute.xlu0 %766
    %770 = vset.pattern.permute.xlu0 0
    %771 = vperm.xlu0 %770, %v557
    %v772 = vpop.permute.xlu0 %771
    %775 = vset.pattern.permute.xlu0 0
    %776 = vperm.xlu0 %775, %v558
    %v777 = vpop.permute.xlu0 %776
    %780 = vset.pattern.permute.xlu0 0
    %781 = vperm.xlu0 %780, %v559
    %v782 = vpop.permute.xlu0 %781
    %785 = vset.pattern.permute.xlu0 0
    %786 = vperm.xlu0 %785, %v560
    %v787 = vpop.permute.xlu0 %786
    %790 = vset.pattern.permute.xlu0 0
    %791 = vperm.xlu0 %790, %v561
    %v792 = vpop.permute.xlu0 %791
    %795 = vset.pattern.permute.xlu0 0
    %796 = vperm.xlu0 %795, %v562
    %v797 = vpop.permute.xlu0 %796
    %800 = vset.pattern.permute.xlu0 0
    %801 = vperm.xlu0 %800, %v563
    %v802 = vpop.permute.xlu0 %801
    %805 = vset.pattern.permute.xlu0 0
    %806 = vperm.xlu0 %805, %v564
    %v807 = vpop.permute.xlu0 %806
    %810 = vset.pattern.permute.xlu0 0
    %811 = vperm.xlu0 %810, %v565
    %v812 = vpop.permute.xlu0 %811
    %815 = vset.pattern.permute.xlu0 0
    %816 = vperm.xlu0 %815, %v566
    %v817 = vpop.permute.xlu0 %816
    %820 = vset.pattern.permute.xlu0 0
    %821 = vperm.xlu0 %820, %v567
    %v822 = vpop.permute.xlu0 %821
    %825 = vset.pattern.permute.xlu0 0
    %826 = vperm.xlu0 %825, %v568
    %v827 = vpop.permute.xlu0 %826
    %830 = vset.pattern.permute.xlu0 0
    %831 = vperm.xlu0 %830, %v569
    %v832 = vpop.permute.xlu0 %831
    %835 = vset.pattern.permute.xlu0 0
    %836 = vperm.xlu0 %835, %v570
    %v837 = vpop.permute.xlu0 %836
    %840 = vset.pattern.permute.xlu0 0
    %841 = vperm.xlu0 %840, %v571
    %v842 = vpop.permute.xlu0 %841
    %845 = vset.pattern.permute.xlu0 0
    %846 = vperm.xlu0 %845, %v572
    %v847 = vpop.permute.xlu0 %846
    %850 = vset.pattern.permute.xlu0 0
    %851 = vperm.xlu0 %850, %v573
    %v852 = vpop.permute.xlu0 %851
    %855 = vset.pattern.permute.xlu0 0
    %856 = vperm.xlu0 %855, %v574
    %v857 = vpop.permute.xlu0 %856
    %860 = vset.pattern.permute.xlu0 0
    %861 = vperm.xlu0 %860, %v575
    %v862 = vpop.permute.xlu0 %861
    %865 = vset.pattern.permute.xlu0 0
    %866 = vperm.xlu0 %865, %v576
    %v867 = vpop.permute.xlu0 %866
    %870 = vset.pattern.permute.xlu0 0
    %871 = vperm.xlu0 %870, %v577
    %v872 = vpop.permute.xlu0 %871
    %875 = vset.pattern.permute.xlu0 0
    %876 = vperm.xlu0 %875, %v578
    %v877 = vpop.permute.xlu0 %876
    %880 = vset.pattern.permute.xlu0 0
    %881 = vperm.xlu0 %880, %v579
    %v882 = vpop.permute.xlu0 %881
    %885 = vset.pattern.permute.xlu0 0
    %886 = vperm.xlu0 %885, %v580
    %v887 = vpop.permute.xlu0 %886
    %890 = vset.pattern.permute.xlu0 0
    %891 = vperm.xlu0 %890, %v581
    %v892 = vpop.permute.xlu0 %891
    %895 = vset.pattern.permute.xlu0 0
    %896 = vperm.xlu0 %895, %v582
    %v897 = vpop.permute.xlu0 %896
    %900 = vset.pattern.permute.xlu0 0
    %901 = vperm.xlu0 %900, %v583
    %v902 = vpop.permute.xlu0 %901
    %v904 = vsub.f32 %v360, %v747
    %v905 = vsub.f32 %v361, %v747
    %v906 = vsub.f32 %v362, %v752
    %v907 = vsub.f32 %v363, %v752
    %v908 = vsub.f32 %v364, %v757
    %v909 = vsub.f32 %v365, %v757
    %v910 = vsub.f32 %v366, %v762
    %v911 = vsub.f32 %v367, %v762
    %v912 = vsub.f32 %v368, %v767
    %v913 = vsub.f32 %v369, %v767
    %v914 = vsub.f32 %v370, %v772
    %v915 = vsub.f32 %v371, %v772
    %v916 = vsub.f32 %v372, %v777
    %v917 = vsub.f32 %v373, %v777
    %v918 = vsub.f32 %v374, %v782
    %v919 = vsub.f32 %v375, %v782
    %v920 = vsub.f32 %v376, %v787
    %v921 = vsub.f32 %v377, %v787
    %v922 = vsub.f32 %v378, %v792
    %v923 = vsub.f32 %v379, %v792
    %v924 = vsub.f32 %v380, %v797
    %v925 = vsub.f32 %v381, %v797
    %v926 = vsub.f32 %v382, %v802
    %v927 = vsub.f32 %v383, %v802
    %v928 = vsub.f32 %v384, %v807
    %v929 = vsub.f32 %v385, %v807
    %v930 = vsub.f32 %v386, %v812
    %v931 = vsub.f32 %v387, %v812
    %v932 = vsub.f32 %v388, %v817
    %v933 = vsub.f32 %v389, %v817
    %v934 = vsub.f32 %v390, %v822
    %v935 = vsub.f32 %v391, %v822
    %v936 = vsub.f32 %v392, %v827
    %v937 = vsub.f32 %v393, %v827
    %v938 = vsub.f32 %v394, %v832
    %v939 = vsub.f32 %v395, %v832
    %v940 = vsub.f32 %v396, %v837
    %v941 = vsub.f32 %v397, %v837
    %v942 = vsub.f32 %v398, %v842
    %v943 = vsub.f32 %v399, %v842
    %v944 = vsub.f32 %v400, %v847
    %v945 = vsub.f32 %v401, %v847
    %v946 = vsub.f32 %v402, %v852
    %v947 = vsub.f32 %v403, %v852
    %v948 = vsub.f32 %v404, %v857
    %v949 = vsub.f32 %v405, %v857
    %v950 = vsub.f32 %v406, %v862
    %v951 = vsub.f32 %v407, %v862
    %v952 = vsub.f32 %v408, %v867
    %v953 = vsub.f32 %v409, %v867
    %v954 = vsub.f32 %v410, %v872
    %v955 = vsub.f32 %v411, %v872
    %v956 = vsub.f32 %v412, %v877
    %v957 = vsub.f32 %v413, %v877
    %v958 = vsub.f32 %v414, %v882
    %v959 = vsub.f32 %v415, %v882
    %v960 = vsub.f32 %v416, %v887
    %v961 = vsub.f32 %v417, %v887
    %v962 = vsub.f32 %v418, %v892
    %v963 = vsub.f32 %v419, %v892
    %v964 = vsub.f32 %v420, %v897
    %v965 = vsub.f32 %v421, %v897
    %v966 = vsub.f32 %v422, %v902
    %v967 = vsub.f32 %v423, %v902
    %v968 = vmul.f32 %v904, 1.442695
    %v969 = vpow.pop %v968
    %v970 = vmul.f32 %v905, 1.442695
    %v971 = vpow.pop %v970
    %v972 = vmul.f32 %v906, 1.442695
    %v973 = vpow.pop %v972
    %v974 = vmul.f32 %v907, 1.442695
    %v975 = vpow.pop %v974
    %v976 = vmul.f32 %v908, 1.442695
    %v977 = vpow.pop %v976
    %v978 = vmul.f32 %v909, 1.442695
    %v979 = vpow.pop %v978
    %v980 = vmul.f32 %v910, 1.442695
    %v981 = vpow.pop %v980
    %v982 = vmul.f32 %v911, 1.442695
    %v983 = vpow.pop %v982
    %v984 = vmul.f32 %v912, 1.442695
    %v985 = vpow.pop %v984
    %v986 = vmul.f32 %v913, 1.442695
    %v987 = vpow.pop %v986
    %v988 = vmul.f32 %v914, 1.442695
    %v989 = vpow.pop %v988
    %v990 = vmul.f32 %v915, 1.442695
    %v991 = vpow.pop %v990
    %v992 = vmul.f32 %v916, 1.442695
    %v993 = vpow.pop %v992
    %v994 = vmul.f32 %v917, 1.442695
    %v995 = vpow.pop %v994
    %v996 = vmul.f32 %v918, 1.442695
    %v997 = vpow.pop %v996
    %v998 = vmul.f32 %v919, 1.442695
    %v999 = vpow.pop %v998
    %v1000 = vmul.f32 %v920, 1.442695
    %v1001 = vpow.pop %v1000
    %v1002 = vmul.f32 %v921, 1.442695
    %v1003 = vpow.pop %v1002
    %v1004 = vmul.f32 %v922, 1.442695
    %v1005 = vpow.pop %v1004
    %v1006 = vmul.f32 %v923, 1.442695
    %v1007 = vpow.pop %v1006
    %v1008 = vmul.f32 %v924, 1.442695
    %v1009 = vpow.pop %v1008
    %v1010 = vmul.f32 %v925, 1.442695
    %v1011 = vpow.pop %v1010
    %v1012 = vmul.f32 %v926, 1.442695
    %v1013 = vpow.pop %v1012
    %v1014 = vmul.f32 %v927, 1.442695
    %v1015 = vpow.pop %v1014
    %v1016 = vmul.f32 %v928, 1.442695
    %v1017 = vpow.pop %v1016
    %v1018 = vmul.f32 %v929, 1.442695
    %v1019 = vpow.pop %v1018
    %v1020 = vmul.f32 %v930, 1.442695
    %v1021 = vpow.pop %v1020
    %v1022 = vmul.f32 %v931, 1.442695
    %v1023 = vpow.pop %v1022
    %v1024 = vmul.f32 %v932, 1.442695
    %v1025 = vpow.pop %v1024
    %v1026 = vmul.f32 %v933, 1.442695
    %v1027 = vpow.pop %v1026
    %v1028 = vmul.f32 %v934, 1.442695
    %v1029 = vpow.pop %v1028
    %v1030 = vmul.f32 %v935, 1.442695
    %v1031 = vpow.pop %v1030
    %v1032 = vmul.f32 %v936, 1.442695
    %v1033 = vpow.pop %v1032
    %v1034 = vmul.f32 %v937, 1.442695
    %v1035 = vpow.pop %v1034
    %v1036 = vmul.f32 %v938, 1.442695
    %v1037 = vpow.pop %v1036
    %v1038 = vmul.f32 %v939, 1.442695
    %v1039 = vpow.pop %v1038
    %v1040 = vmul.f32 %v940, 1.442695
    %v1041 = vpow.pop %v1040
    %v1042 = vmul.f32 %v941, 1.442695
    %v1043 = vpow.pop %v1042
    %v1044 = vmul.f32 %v942, 1.442695
    %v1045 = vpow.pop %v1044
    %v1046 = vmul.f32 %v943, 1.442695
    %v1047 = vpow.pop %v1046
    %v1048 = vmul.f32 %v944, 1.442695
    %v1049 = vpow.pop %v1048
    %v1050 = vmul.f32 %v945, 1.442695
    %v1051 = vpow.pop %v1050
    %v1052 = vmul.f32 %v946, 1.442695
    %v1053 = vpow.pop %v1052
    %v1054 = vmul.f32 %v947, 1.442695
    %v1055 = vpow.pop %v1054
    %v1056 = vmul.f32 %v948, 1.442695
    %v1057 = vpow.pop %v1056
    %v1058 = vmul.f32 %v949, 1.442695
    %v1059 = vpow.pop %v1058
    %v1060 = vmul.f32 %v950, 1.442695
    %v1061 = vpow.pop %v1060
    %v1062 = vmul.f32 %v951, 1.442695
    %v1063 = vpow.pop %v1062
    %v1064 = vmul.f32 %v952, 1.442695
    %v1065 = vpow.pop %v1064
    %v1066 = vmul.f32 %v953, 1.442695
    %v1067 = vpow.pop %v1066
    %v1068 = vmul.f32 %v954, 1.442695
    %v1069 = vpow.pop %v1068
    %v1070 = vmul.f32 %v955, 1.442695
    %v1071 = vpow.pop %v1070
    %v1072 = vmul.f32 %v956, 1.442695
    %v1073 = vpow.pop %v1072
    %v1074 = vmul.f32 %v957, 1.442695
    %v1075 = vpow.pop %v1074
    %v1076 = vmul.f32 %v958, 1.442695
    %v1077 = vpow.pop %v1076
    %v1078 = vmul.f32 %v959, 1.442695
    %v1079 = vpow.pop %v1078
    %v1080 = vmul.f32 %v960, 1.442695
    %v1081 = vpow.pop %v1080
    %v1082 = vmul.f32 %v961, 1.442695
    %v1083 = vpow.pop %v1082
    %v1084 = vmul.f32 %v962, 1.442695
    %v1085 = vpow.pop %v1084
    %v1086 = vmul.f32 %v963, 1.442695
    %v1087 = vpow.pop %v1086
    %v1088 = vmul.f32 %v964, 1.442695
    %v1089 = vpow.pop %v1088
    %v1090 = vmul.f32 %v965, 1.442695
    %v1091 = vpow.pop %v1090
    %v1092 = vmul.f32 %v966, 1.442695
    %v1093 = vpow.pop %v1092
    %v1094 = vmul.f32 %v967, 1.442695
    %v1095 = vpow.pop %v1094
    %v1096 = vadd.f32 %v969, %v971
    %1097 = vadd.xlane.f32.xlu0 %v1096
    %v1098 = vpop.xlane.xlu0 %1097
    %v1099 = vadd.f32 %v973, %v975
    %1100 = vadd.xlane.f32.xlu0 %v1099
    %v1101 = vpop.xlane.xlu0 %1100
    %v1102 = vadd.f32 %v977, %v979
    %1103 = vadd.xlane.f32.xlu0 %v1102
    %v1104 = vpop.xlane.xlu0 %1103
    %v1105 = vadd.f32 %v981, %v983
    %1106 = vadd.xlane.f32.xlu0 %v1105
    %v1107 = vpop.xlane.xlu0 %1106
    %v1108 = vadd.f32 %v985, %v987
    %1109 = vadd.xlane.f32.xlu0 %v1108
    %v1110 = vpop.xlane.xlu0 %1109
    %v1111 = vadd.f32 %v989, %v991
    %1112 = vadd.xlane.f32.xlu0 %v1111
    %v1113 = vpop.xlane.xlu0 %1112
    %v1114 = vadd.f32 %v993, %v995
    %1115 = vadd.xlane.f32.xlu0 %v1114
    %v1116 = vpop.xlane.xlu0 %1115
    %v1117 = vadd.f32 %v997, %v999
    %1118 = vadd.xlane.f32.xlu0 %v1117
    %v1119 = vpop.xlane.xlu0 %1118
    %v1120 = vadd.f32 %v1001, %v1003
    %1121 = vadd.xlane.f32.xlu0 %v1120
    %v1122 = vpop.xlane.xlu0 %1121
    %v1123 = vadd.f32 %v1005, %v1007
    %1124 = vadd.xlane.f32.xlu0 %v1123
    %v1125 = vpop.xlane.xlu0 %1124
    %v1126 = vadd.f32 %v1009, %v1011
    %1127 = vadd.xlane.f32.xlu0 %v1126
    %v1128 = vpop.xlane.xlu0 %1127
    %v1129 = vadd.f32 %v1013, %v1015
    %1130 = vadd.xlane.f32.xlu0 %v1129
    %v1131 = vpop.xlane.xlu0 %1130
    %v1132 = vadd.f32 %v1017, %v1019
    %1133 = vadd.xlane.f32.xlu0 %v1132
    %v1134 = vpop.xlane.xlu0 %1133
    %v1135 = vadd.f32 %v1021, %v1023
    %1136 = vadd.xlane.f32.xlu0 %v1135
    %v1137 = vpop.xlane.xlu0 %1136
    %v1138 = vadd.f32 %v1025, %v1027
    %1139 = vadd.xlane.f32.xlu0 %v1138
    %v1140 = vpop.xlane.xlu0 %1139
    %v1141 = vadd.f32 %v1029, %v1031
    %1142 = vadd.xlane.f32.xlu0 %v1141
    %v1143 = vpop.xlane.xlu0 %1142
    %v1144 = vadd.f32 %v1033, %v1035
    %1145 = vadd.xlane.f32.xlu0 %v1144
    %v1146 = vpop.xlane.xlu0 %1145
    %v1147 = vadd.f32 %v1037, %v1039
    %1148 = vadd.xlane.f32.xlu0 %v1147
    %v1149 = vpop.xlane.xlu0 %1148
    %v1150 = vadd.f32 %v1041, %v1043
    %1151 = vadd.xlane.f32.xlu0 %v1150
    %v1152 = vpop.xlane.xlu0 %1151
    %v1153 = vadd.f32 %v1045, %v1047
    %1154 = vadd.xlane.f32.xlu0 %v1153
    %v1155 = vpop.xlane.xlu0 %1154
    %v1156 = vadd.f32 %v1049, %v1051
    %1157 = vadd.xlane.f32.xlu0 %v1156
    %v1158 = vpop.xlane.xlu0 %1157
    %v1159 = vadd.f32 %v1053, %v1055
    %1160 = vadd.xlane.f32.xlu0 %v1159
    %v1161 = vpop.xlane.xlu0 %1160
    %v1162 = vadd.f32 %v1057, %v1059
    %1163 = vadd.xlane.f32.xlu0 %v1162
    %v1164 = vpop.xlane.xlu0 %1163
    %v1165 = vadd.f32 %v1061, %v1063
    %1166 = vadd.xlane.f32.xlu0 %v1165
    %v1167 = vpop.xlane.xlu0 %1166
    %v1168 = vadd.f32 %v1065, %v1067
    %1169 = vadd.xlane.f32.xlu0 %v1168
    %v1170 = vpop.xlane.xlu0 %1169
    %v1171 = vadd.f32 %v1069, %v1071
    %1172 = vadd.xlane.f32.xlu0 %v1171
    %v1173 = vpop.xlane.xlu0 %1172
    %v1174 = vadd.f32 %v1073, %v1075
    %1175 = vadd.xlane.f32.xlu0 %v1174
    %v1176 = vpop.xlane.xlu0 %1175
    %v1177 = vadd.f32 %v1077, %v1079
    %1178 = vadd.xlane.f32.xlu0 %v1177
    %v1179 = vpop.xlane.xlu0 %1178
    %v1180 = vadd.f32 %v1081, %v1083
    %1181 = vadd.xlane.f32.xlu0 %v1180
    %v1182 = vpop.xlane.xlu0 %1181
    %v1183 = vadd.f32 %v1085, %v1087
    %1184 = vadd.xlane.f32.xlu0 %v1183
    %v1185 = vpop.xlane.xlu0 %1184
    %v1186 = vadd.f32 %v1089, %v1091
    %1187 = vadd.xlane.f32.xlu0 %v1186
    %v1188 = vpop.xlane.xlu0 %1187
    %v1189 = vadd.f32 %v1093, %v1095
    %1190 = vadd.xlane.f32.xlu0 %v1189
    %v1191 = vpop.xlane.xlu0 %1190
    %v1192 = vadd.f32 %v712, %v1098
    %v1193 = vadd.f32 %v713, %v1101
    %v1194 = vadd.f32 %v714, %v1104
    %v1195 = vadd.f32 %v715, %v1107
    %v1196 = vadd.f32 %v716, %v1110
    %v1197 = vadd.f32 %v717, %v1113
    %v1198 = vadd.f32 %v718, %v1116
    %v1199 = vadd.f32 %v719, %v1119
    %v1200 = vadd.f32 %v720, %v1122
    %v1201 = vadd.f32 %v721, %v1125
    %v1202 = vadd.f32 %v722, %v1128
    %v1203 = vadd.f32 %v723, %v1131
    %v1204 = vadd.f32 %v724, %v1134
    %v1205 = vadd.f32 %v725, %v1137
    %v1206 = vadd.f32 %v726, %v1140
    %v1207 = vadd.f32 %v727, %v1143
    %v1208 = vadd.f32 %v728, %v1146
    %v1209 = vadd.f32 %v729, %v1149
    %v1210 = vadd.f32 %v730, %v1152
    %v1211 = vadd.f32 %v731, %v1155
    %v1212 = vadd.f32 %v732, %v1158
    %v1213 = vadd.f32 %v733, %v1161
    %v1214 = vadd.f32 %v734, %v1164
    %v1215 = vadd.f32 %v735, %v1167
    %v1216 = vadd.f32 %v736, %v1170
    %v1217 = vadd.f32 %v737, %v1173
    %v1218 = vadd.f32 %v738, %v1176
    %v1219 = vadd.f32 %v739, %v1179
    %v1220 = vadd.f32 %v740, %v1182
    %v1221 = vadd.f32 %v741, %v1185
    %v1222 = vadd.f32 %v742, %v1188
    %v1223 = vadd.f32 %v743, %v1191
    %vm1224 = vcmask 7168
    %1225 = vst.msk [vmem:[#allocation3] sm:$0xff] %vm1224, %v1192
    %1226 = vst.msk [vmem:[#allocation3 + $0x8] sm:$0xff] %vm1224, %v1193
    %1227 = vst.msk [vmem:[#allocation3 + $0x10] sm:$0xff] %vm1224, %v1194
    %1228 = vst.msk [vmem:[#allocation3 + $0x18] sm:$0xff] %vm1224, %v1195
    %1229 = vst.msk [vmem:[#allocation3 + $0x20] sm:$0xff] %vm1224, %v1196
    %1230 = vst.msk [vmem:[#allocation3 + $0x28] sm:$0xff] %vm1224, %v1197
    %1231 = vst.msk [vmem:[#allocation3 + $0x30] sm:$0xff] %vm1224, %v1198
    %1232 = vst.msk [vmem:[#allocation3 + $0x38] sm:$0xff] %vm1224, %v1199
    %1233 = vst.msk [vmem:[#allocation3 + $0x40] sm:$0xff] %vm1224, %v1200
    %1234 = vst.msk [vmem:[#allocation3 + $0x48] sm:$0xff] %vm1224, %v1201
    %1235 = vst.msk [vmem:[#allocation3 + $0x50] sm:$0xff] %vm1224, %v1202
    %1236 = vst.msk [vmem:[#allocation3 + $0x58] sm:$0xff] %vm1224, %v1203
    %1237 = vst.msk [vmem:[#allocation3 + $0x60] sm:$0xff] %vm1224, %v1204
    %1238 = vst.msk [vmem:[#allocation3 + $0x68] sm:$0xff] %vm1224, %v1205
    %1239 = vst.msk [vmem:[#allocation3 + $0x70] sm:$0xff] %vm1224, %v1206
    %1240 = vst.msk [vmem:[#allocation3 + $0x78] sm:$0xff] %vm1224, %v1207
    %1241 = vst.msk [vmem:[#allocation3 + $0x80] sm:$0xff] %vm1224, %v1208
    %1242 = vst.msk [vmem:[#allocation3 + $0x88] sm:$0xff] %vm1224, %v1209
    %1243 = vst.msk [vmem:[#allocation3 + $0x90] sm:$0xff] %vm1224, %v1210
    %1244 = vst.msk [vmem:[#allocation3 + $0x98] sm:$0xff] %vm1224, %v1211
    %1245 = vst.msk [vmem:[#allocation3 + $0xa0] sm:$0xff] %vm1224, %v1212
    %1246 = vst.msk [vmem:[#allocation3 + $0xa8] sm:$0xff] %vm1224, %v1213
    %1247 = vst.msk [vmem:[#allocation3 + $0xb0] sm:$0xff] %vm1224, %v1214
    %1248 = vst.msk [vmem:[#allocation3 + $0xb8] sm:$0xff] %vm1224, %v1215
    %1249 = vst.msk [vmem:[#allocation3 + $0xc0] sm:$0xff] %vm1224, %v1216
    %1250 = vst.msk [vmem:[#allocation3 + $0xc8] sm:$0xff] %vm1224, %v1217
    %1251 = vst.msk [vmem:[#allocation3 + $0xd0] sm:$0xff] %vm1224, %v1218
    %1252 = vst.msk [vmem:[#allocation3 + $0xd8] sm:$0xff] %vm1224, %v1219
    %1253 = vst.msk [vmem:[#allocation3 + $0xe0] sm:$0xff] %vm1224, %v1220
    %1254 = vst.msk [vmem:[#allocation3 + $0xe8] sm:$0xff] %vm1224, %v1221
    %1255 = vst.msk [vmem:[#allocation3 + $0xf0] sm:$0xff] %vm1224, %v1222
    %1256 = vst.msk [vmem:[#allocation3 + $0xf8] sm:$0xff] %vm1224, %v1223
    %1257 = vst.msk [vmem:[#allocation2] sm:$0xff] %vm1224, %v552
    %1258 = vst.msk [vmem:[#allocation2 + $0x8] sm:$0xff] %vm1224, %v553
    %1259 = vst.msk [vmem:[#allocation2 + $0x10] sm:$0xff] %vm1224, %v554
    %1260 = vst.msk [vmem:[#allocation2 + $0x18] sm:$0xff] %vm1224, %v555
    %1261 = vst.msk [vmem:[#allocation2 + $0x20] sm:$0xff] %vm1224, %v556
    %1262 = vst.msk [vmem:[#allocation2 + $0x28] sm:$0xff] %vm1224, %v557
    %1263 = vst.msk [vmem:[#allocation2 + $0x30] sm:$0xff] %vm1224, %v558
    %1264 = vst.msk [vmem:[#allocation2 + $0x38] sm:$0xff] %vm1224, %v559
    %1265 = vst.msk [vmem:[#allocation2 + $0x40] sm:$0xff] %vm1224, %v560
    %1266 = vst.msk [vmem:[#allocation2 + $0x48] sm:$0xff] %vm1224, %v561
    %1267 = vst.msk [vmem:[#allocation2 + $0x50] sm:$0xff] %vm1224, %v562
    %1268 = vst.msk [vmem:[#allocation2 + $0x58] sm:$0xff] %vm1224, %v563
    %1269 = vst.msk [vmem:[#allocation2 + $0x60] sm:$0xff] %vm1224, %v564
    %1270 = vst.msk [vmem:[#allocation2 + $0x68] sm:$0xff] %vm1224, %v565
    %1271 = vst.msk [vmem:[#allocation2 + $0x70] sm:$0xff] %vm1224, %v566
    %1272 = vst.msk [vmem:[#allocation2 + $0x78] sm:$0xff] %vm1224, %v567
    %1273 = vst.msk [vmem:[#allocation2 + $0x80] sm:$0xff] %vm1224, %v568
    %1274 = vst.msk [vmem:[#allocation2 + $0x88] sm:$0xff] %vm1224, %v569
    %1275 = vst.msk [vmem:[#allocation2 + $0x90] sm:$0xff] %vm1224, %v570
    %1276 = vst.msk [vmem:[#allocation2 + $0x98] sm:$0xff] %vm1224, %v571
    %1277 = vst.msk [vmem:[#allocation2 + $0xa0] sm:$0xff] %vm1224, %v572
    %1278 = vst.msk [vmem:[#allocation2 + $0xa8] sm:$0xff] %vm1224, %v573
    %1279 = vst.msk [vmem:[#allocation2 + $0xb0] sm:$0xff] %vm1224, %v574
    %1280 = vst.msk [vmem:[#allocation2 + $0xb8] sm:$0xff] %vm1224, %v575
    %1281 = vst.msk [vmem:[#allocation2 + $0xc0] sm:$0xff] %vm1224, %v576
    %1282 = vst.msk [vmem:[#allocation2 + $0xc8] sm:$0xff] %vm1224, %v577
    %1283 = vst.msk [vmem:[#allocation2 + $0xd0] sm:$0xff] %vm1224, %v578
    %1284 = vst.msk [vmem:[#allocation2 + $0xd8] sm:$0xff] %vm1224, %v579
    %1285 = vst.msk [vmem:[#allocation2 + $0xe0] sm:$0xff] %vm1224, %v580
    %1286 = vst.msk [vmem:[#allocation2 + $0xe8] sm:$0xff] %vm1224, %v581
    %1287 = vst.msk [vmem:[#allocation2 + $0xf0] sm:$0xff] %vm1224, %v582
    %1288 = vst.msk [vmem:[#allocation2 + $0xf8] sm:$0xff] %vm1224, %v583
    %s1289 = sadd.s32 0, 1
    %s1290 = smul.u32 %s1289, 256
    %p1291 = scmp.lt.s32.totalorder %s124, %s1290
    %s1292 = sadd.s32 0, 1
    %s1293 = smul.u32 %s1292, 256
    %p1294 = scmp.lt.s32.totalorder %s191, %s1293
    %p1295 = pnand %p1291, %p1294
    %p1296 = pneg %p1295
    // Predicated region
    $region14: #{tpu_custom_call.1} parent=1 // pred_check
      _
    $region15: #{tpu_custom_call.1} parent=1 // pred_check_branch
      %1298 = sbr.rel (%p1295) target = $region17
    $region16: #{tpu_custom_call.1} parent=1 // pred_region
      %v1299 = vld [vmem:[#allocation4] sm:$0xff]
      %v1300 = vld [vmem:[#allocation4 + $0x8] sm:$0xff]
      %v1301 = vld [vmem:[#allocation4 + $0x10] sm:$0xff]
      %v1302 = vld [vmem:[#allocation4 + $0x18] sm:$0xff]
      %v1303 = vld [vmem:[#allocation4 + $0x20] sm:$0xff]
      %v1304 = vld [vmem:[#allocation4 + $0x28] sm:$0xff]
      %v1305 = vld [vmem:[#allocation4 + $0x30] sm:$0xff]
      %v1306 = vld [vmem:[#allocation4 + $0x38] sm:$0xff]
      %v1307 = vld [vmem:[#allocation4 + $0x40] sm:$0xff]
      %v1308 = vld [vmem:[#allocation4 + $0x48] sm:$0xff]
      %v1309 = vld [vmem:[#allocation4 + $0x50] sm:$0xff]
      %v1310 = vld [vmem:[#allocation4 + $0x58] sm:$0xff]
      %v1311 = vld [vmem:[#allocation4 + $0x60] sm:$0xff]
      %v1312 = vld [vmem:[#allocation4 + $0x68] sm:$0xff]
      %v1313 = vld [vmem:[#allocation4 + $0x70] sm:$0xff]
      %v1314 = vld [vmem:[#allocation4 + $0x78] sm:$0xff]
      %v1315 = vld [vmem:[#allocation4 + $0x80] sm:$0xff]
      %v1316 = vld [vmem:[#allocation4 + $0x88] sm:$0xff]
      %v1317 = vld [vmem:[#allocation4 + $0x90] sm:$0xff]
      %v1318 = vld [vmem:[#allocation4 + $0x98] sm:$0xff]
      %v1319 = vld [vmem:[#allocation4 + $0xa0] sm:$0xff]
      %v1320 = vld [vmem:[#allocation4 + $0xa8] sm:$0xff]
      %v1321 = vld [vmem:[#allocation4 + $0xb0] sm:$0xff]
      %v1322 = vld [vmem:[#allocation4 + $0xb8] sm:$0xff]
      %v1323 = vld [vmem:[#allocation4 + $0xc0] sm:$0xff]
      %v1324 = vld [vmem:[#allocation4 + $0xc8] sm:$0xff]
      %v1325 = vld [vmem:[#allocation4 + $0xd0] sm:$0xff]
      %v1326 = vld [vmem:[#allocation4 + $0xd8] sm:$0xff]
      %v1327 = vld [vmem:[#allocation4 + $0xe0] sm:$0xff]
      %v1328 = vld [vmem:[#allocation4 + $0xe8] sm:$0xff]
      %v1329 = vld [vmem:[#allocation4 + $0xf0] sm:$0xff]
      %v1330 = vld [vmem:[#allocation4 + $0xf8] sm:$0xff]
      %vm1331 = vcmp.eq.s32.totalorder %v159, %v196
      %vm1332 = vcmp.eq.s32.totalorder %v159, %v197
      %vm1333 = vcmp.eq.s32.totalorder %v160, %v196
      %vm1334 = vcmp.eq.s32.totalorder %v160, %v197
      %vm1335 = vcmp.eq.s32.totalorder %v161, %v196
      %vm1336 = vcmp.eq.s32.totalorder %v161, %v197
      %vm1337 = vcmp.eq.s32.totalorder %v162, %v196
      %vm1338 = vcmp.eq.s32.totalorder %v162, %v197
      %vm1339 = vcmp.eq.s32.totalorder %v163, %v196
      %vm1340 = vcmp.eq.s32.totalorder %v163, %v197
      %vm1341 = vcmp.eq.s32.totalorder %v164, %v196
      %vm1342 = vcmp.eq.s32.totalorder %v164, %v197
      %vm1343 = vcmp.eq.s32.totalorder %v165, %v196
      %vm1344 = vcmp.eq.s32.totalorder %v165, %v197
      %vm1345 = vcmp.eq.s32.totalorder %v166, %v196
      %vm1346 = vcmp.eq.s32.totalorder %v166, %v197
      %vm1347 = vcmp.eq.s32.totalorder %v167, %v196
      %vm1348 = vcmp.eq.s32.totalorder %v167, %v197
      %vm1349 = vcmp.eq.s32.totalorder %v168, %v196
      %vm1350 = vcmp.eq.s32.totalorder %v168, %v197
      %vm1351 = vcmp.eq.s32.totalorder %v169, %v196
      %vm1352 = vcmp.eq.s32.totalorder %v169, %v197
      %vm1353 = vcmp.eq.s32.totalorder %v170, %v196
      %vm1354 = vcmp.eq.s32.totalorder %v170, %v197
      %vm1355 = vcmp.eq.s32.totalorder %v171, %v196
      %vm1356 = vcmp.eq.s32.totalorder %v171, %v197
      %vm1357 = vcmp.eq.s32.totalorder %v172, %v196
      %vm1358 = vcmp.eq.s32.totalorder %v172, %v197
      %vm1359 = vcmp.eq.s32.totalorder %v173, %v196
      %vm1360 = vcmp.eq.s32.totalorder %v173, %v197
      %vm1361 = vcmp.eq.s32.totalorder %v174, %v196
      %vm1362 = vcmp.eq.s32.totalorder %v174, %v197
      %vm1363 = vcmp.eq.s32.totalorder %v175, %v196
      %vm1364 = vcmp.eq.s32.totalorder %v175, %v197
      %vm1365 = vcmp.eq.s32.totalorder %v176, %v196
      %vm1366 = vcmp.eq.s32.totalorder %v176, %v197
      %vm1367 = vcmp.eq.s32.totalorder %v177, %v196
      %vm1368 = vcmp.eq.s32.totalorder %v177, %v197
      %vm1369 = vcmp.eq.s32.totalorder %v178, %v196
      %vm1370 = vcmp.eq.s32.totalorder %v178, %v197
      %vm1371 = vcmp.eq.s32.totalorder %v179, %v196
      %vm1372 = vcmp.eq.s32.totalorder %v179, %v197
      %vm1373 = vcmp.eq.s32.totalorder %v180, %v196
      %vm1374 = vcmp.eq.s32.totalorder %v180, %v197
      %vm1375 = vcmp.eq.s32.totalorder %v181, %v196
      %vm1376 = vcmp.eq.s32.totalorder %v181, %v197
      %vm1377 = vcmp.eq.s32.totalorder %v182, %v196
      %vm1378 = vcmp.eq.s32.totalorder %v182, %v197
      %vm1379 = vcmp.eq.s32.totalorder %v183, %v196
      %vm1380 = vcmp.eq.s32.totalorder %v183, %v197
      %vm1381 = vcmp.eq.s32.totalorder %v184, %v196
      %vm1382 = vcmp.eq.s32.totalorder %v184, %v197
      %vm1383 = vcmp.eq.s32.totalorder %v185, %v196
      %vm1384 = vcmp.eq.s32.totalorder %v185, %v197
      %vm1385 = vcmp.eq.s32.totalorder %v186, %v196
      %vm1386 = vcmp.eq.s32.totalorder %v186, %v197
      %vm1387 = vcmp.eq.s32.totalorder %v187, %v196
      %vm1388 = vcmp.eq.s32.totalorder %v187, %v197
      %vm1389 = vcmp.eq.s32.totalorder %v188, %v196
      %vm1390 = vcmp.eq.s32.totalorder %v188, %v197
      %vm1391 = vcmp.eq.s32.totalorder %v189, %v196
      %vm1392 = vcmp.eq.s32.totalorder %v189, %v197
      %vm1393 = vcmp.eq.s32.totalorder %v190, %v196
      %vm1394 = vcmp.eq.s32.totalorder %v190, %v197
      %v1395 = vsel %vm1331, %v360, 0.0
      %v1396 = vsel %vm1332, %v361, 0.0
      %v1397 = vsel %vm1333, %v362, 0.0
      %v1398 = vsel %vm1334, %v363, 0.0
      %v1399 = vsel %vm1335, %v364, 0.0
      %v1400 = vsel %vm1336, %v365, 0.0
      %v1401 = vsel %vm1337, %v366, 0.0
      %v1402 = vsel %vm1338, %v367, 0.0
      %v1403 = vsel %vm1339, %v368, 0.0
      %v1404 = vsel %vm1340, %v369, 0.0
      %v1405 = vsel %vm1341, %v370, 0.0
      %v1406 = vsel %vm1342, %v371, 0.0
      %v1407 = vsel %vm1343, %v372, 0.0
      %v1408 = vsel %vm1344, %v373, 0.0
      %v1409 = vsel %vm1345, %v374, 0.0
      %v1410 = vsel %vm1346, %v375, 0.0
      %v1411 = vsel %vm1347, %v376, 0.0
      %v1412 = vsel %vm1348, %v377, 0.0
      %v1413 = vsel %vm1349, %v378, 0.0
      %v1414 = vsel %vm1350, %v379, 0.0
      %v1415 = vsel %vm1351, %v380, 0.0
      %v1416 = vsel %vm1352, %v381, 0.0
      %v1417 = vsel %vm1353, %v382, 0.0
      %v1418 = vsel %vm1354, %v383, 0.0
      %v1419 = vsel %vm1355, %v384, 0.0
      %v1420 = vsel %vm1356, %v385, 0.0
      %v1421 = vsel %vm1357, %v386, 0.0
      %v1422 = vsel %vm1358, %v387, 0.0
      %v1423 = vsel %vm1359, %v388, 0.0
      %v1424 = vsel %vm1360, %v389, 0.0
      %v1425 = vsel %vm1361, %v390, 0.0
      %v1426 = vsel %vm1362, %v391, 0.0
      %v1427 = vsel %vm1363, %v392, 0.0
      %v1428 = vsel %vm1364, %v393, 0.0
      %v1429 = vsel %vm1365, %v394, 0.0
      %v1430 = vsel %vm1366, %v395, 0.0
      %v1431 = vsel %vm1367, %v396, 0.0
      %v1432 = vsel %vm1368, %v397, 0.0
      %v1433 = vsel %vm1369, %v398, 0.0
      %v1434 = vsel %vm1370, %v399, 0.0
      %v1435 = vsel %vm1371, %v400, 0.0
      %v1436 = vsel %vm1372, %v401, 0.0
      %v1437 = vsel %vm1373, %v402, 0.0
      %v1438 = vsel %vm1374, %v403, 0.0
      %v1439 = vsel %vm1375, %v404, 0.0
      %v1440 = vsel %vm1376, %v405, 0.0
      %v1441 = vsel %vm1377, %v406, 0.0
      %v1442 = vsel %vm1378, %v407, 0.0
      %v1443 = vsel %vm1379, %v408, 0.0
      %v1444 = vsel %vm1380, %v409, 0.0
      %v1445 = vsel %vm1381, %v410, 0.0
      %v1446 = vsel %vm1382, %v411, 0.0
      %v1447 = vsel %vm1383, %v412, 0.0
      %v1448 = vsel %vm1384, %v413, 0.0
      %v1449 = vsel %vm1385, %v414, 0.0
      %v1450 = vsel %vm1386, %v415, 0.0
      %v1451 = vsel %vm1387, %v416, 0.0
      %v1452 = vsel %vm1388, %v417, 0.0
      %v1453 = vsel %vm1389, %v418, 0.0
      %v1454 = vsel %vm1390, %v419, 0.0
      %v1455 = vsel %vm1391, %v420, 0.0
      %v1456 = vsel %vm1392, %v421, 0.0
      %v1457 = vsel %vm1393, %v422, 0.0
      %v1458 = vsel %vm1394, %v423, 0.0
      %v1459 = vadd.f32 %v1395, %v1396
      %1460 = vadd.xlane.f32.xlu0 %v1459
      %v1461 = vpop.xlane.xlu0 %1460
      %v1462 = vadd.f32 %v1397, %v1398
      %1463 = vadd.xlane.f32.xlu0 %v1462
      %v1464 = vpop.xlane.xlu0 %1463
      %v1465 = vadd.f32 %v1399, %v1400
      %1466 = vadd.xlane.f32.xlu0 %v1465
      %v1467 = vpop.xlane.xlu0 %1466
      %v1468 = vadd.f32 %v1401, %v1402
      %1469 = vadd.xlane.f32.xlu0 %v1468
      %v1470 = vpop.xlane.xlu0 %1469
      %v1471 = vadd.f32 %v1403, %v1404
      %1472 = vadd.xlane.f32.xlu0 %v1471
      %v1473 = vpop.xlane.xlu0 %1472
      %v1474 = vadd.f32 %v1405, %v1406
      %1475 = vadd.xlane.f32.xlu0 %v1474
      %v1476 = vpop.xlane.xlu0 %1475
      %v1477 = vadd.f32 %v1407, %v1408
      %1478 = vadd.xlane.f32.xlu0 %v1477
      %v1479 = vpop.xlane.xlu0 %1478
      %v1480 = vadd.f32 %v1409, %v1410
      %1481 = vadd.xlane.f32.xlu0 %v1480
      %v1482 = vpop.xlane.xlu0 %1481
      %v1483 = vadd.f32 %v1411, %v1412
      %1484 = vadd.xlane.f32.xlu0 %v1483
      %v1485 = vpop.xlane.xlu0 %1484
      %v1486 = vadd.f32 %v1413, %v1414
      %1487 = vadd.xlane.f32.xlu0 %v1486
      %v1488 = vpop.xlane.xlu0 %1487
      %v1489 = vadd.f32 %v1415, %v1416
      %1490 = vadd.xlane.f32.xlu0 %v1489
      %v1491 = vpop.xlane.xlu0 %1490
      %v1492 = vadd.f32 %v1417, %v1418
      %1493 = vadd.xlane.f32.xlu0 %v1492
      %v1494 = vpop.xlane.xlu0 %1493
      %v1495 = vadd.f32 %v1419, %v1420
      %1496 = vadd.xlane.f32.xlu0 %v1495
      %v1497 = vpop.xlane.xlu0 %1496
      %v1498 = vadd.f32 %v1421, %v1422
      %1499 = vadd.xlane.f32.xlu0 %v1498
      %v1500 = vpop.xlane.xlu0 %1499
      %v1501 = vadd.f32 %v1423, %v1424
      %1502 = vadd.xlane.f32.xlu0 %v1501
      %v1503 = vpop.xlane.xlu0 %1502
      %v1504 = vadd.f32 %v1425, %v1426
      %1505 = vadd.xlane.f32.xlu0 %v1504
      %v1506 = vpop.xlane.xlu0 %1505
      %v1507 = vadd.f32 %v1427, %v1428
      %1508 = vadd.xlane.f32.xlu0 %v1507
      %v1509 = vpop.xlane.xlu0 %1508
      %v1510 = vadd.f32 %v1429, %v1430
      %1511 = vadd.xlane.f32.xlu0 %v1510
      %v1512 = vpop.xlane.xlu0 %1511
      %v1513 = vadd.f32 %v1431, %v1432
      %1514 = vadd.xlane.f32.xlu0 %v1513
      %v1515 = vpop.xlane.xlu0 %1514
      %v1516 = vadd.f32 %v1433, %v1434
      %1517 = vadd.xlane.f32.xlu0 %v1516
      %v1518 = vpop.xlane.xlu0 %1517
      %v1519 = vadd.f32 %v1435, %v1436
      %1520 = vadd.xlane.f32.xlu0 %v1519
      %v1521 = vpop.xlane.xlu0 %1520
      %v1522 = vadd.f32 %v1437, %v1438
      %1523 = vadd.xlane.f32.xlu0 %v1522
      %v1524 = vpop.xlane.xlu0 %1523
      %v1525 = vadd.f32 %v1439, %v1440
      %1526 = vadd.xlane.f32.xlu0 %v1525
      %v1527 = vpop.xlane.xlu0 %1526
      %v1528 = vadd.f32 %v1441, %v1442
      %1529 = vadd.xlane.f32.xlu0 %v1528
      %v1530 = vpop.xlane.xlu0 %1529
      %v1531 = vadd.f32 %v1443, %v1444
      %1532 = vadd.xlane.f32.xlu0 %v1531
      %v1533 = vpop.xlane.xlu0 %1532
      %v1534 = vadd.f32 %v1445, %v1446
      %1535 = vadd.xlane.f32.xlu0 %v1534
      %v1536 = vpop.xlane.xlu0 %1535
      %v1537 = vadd.f32 %v1447, %v1448
      %1538 = vadd.xlane.f32.xlu0 %v1537
      %v1539 = vpop.xlane.xlu0 %1538
      %v1540 = vadd.f32 %v1449, %v1450
      %1541 = vadd.xlane.f32.xlu0 %v1540
      %v1542 = vpop.xlane.xlu0 %1541
      %v1543 = vadd.f32 %v1451, %v1452
      %1544 = vadd.xlane.f32.xlu0 %v1543
      %v1545 = vpop.xlane.xlu0 %1544
      %v1546 = vadd.f32 %v1453, %v1454
      %1547 = vadd.xlane.f32.xlu0 %v1546
      %v1548 = vpop.xlane.xlu0 %1547
      %v1549 = vadd.f32 %v1455, %v1456
      %1550 = vadd.xlane.f32.xlu0 %v1549
      %v1551 = vpop.xlane.xlu0 %1550
      %v1552 = vadd.f32 %v1457, %v1458
      %1553 = vadd.xlane.f32.xlu0 %v1552
      %v1554 = vpop.xlane.xlu0 %1553
      %v1555 = vadd.f32 %v1299, %v1461
      %v1556 = vadd.f32 %v1300, %v1464
      %v1557 = vadd.f32 %v1301, %v1467
      %v1558 = vadd.f32 %v1302, %v1470
      %v1559 = vadd.f32 %v1303, %v1473
      %v1560 = vadd.f32 %v1304, %v1476
      %v1561 = vadd.f32 %v1305, %v1479
      %v1562 = vadd.f32 %v1306, %v1482
      %v1563 = vadd.f32 %v1307, %v1485
      %v1564 = vadd.f32 %v1308, %v1488
      %v1565 = vadd.f32 %v1309, %v1491
      %v1566 = vadd.f32 %v1310, %v1494
      %v1567 = vadd.f32 %v1311, %v1497
      %v1568 = vadd.f32 %v1312, %v1500
      %v1569 = vadd.f32 %v1313, %v1503
      %v1570 = vadd.f32 %v1314, %v1506
      %v1571 = vadd.f32 %v1315, %v1509
      %v1572 = vadd.f32 %v1316, %v1512
      %v1573 = vadd.f32 %v1317, %v1515
      %v1574 = vadd.f32 %v1318, %v1518
      %v1575 = vadd.f32 %v1319, %v1521
      %v1576 = vadd.f32 %v1320, %v1524
      %v1577 = vadd.f32 %v1321, %v1527
      %v1578 = vadd.f32 %v1322, %v1530
      %v1579 = vadd.f32 %v1323, %v1533
      %v1580 = vadd.f32 %v1324, %v1536
      %v1581 = vadd.f32 %v1325, %v1539
      %v1582 = vadd.f32 %v1326, %v1542
      %v1583 = vadd.f32 %v1327, %v1545
      %v1584 = vadd.f32 %v1328, %v1548
      %v1585 = vadd.f32 %v1329, %v1551
      %v1586 = vadd.f32 %v1330, %v1554
      %1587 = vst.msk [vmem:[#allocation4] sm:$0xff] %vm1224, %v1555
      %1588 = vst.msk [vmem:[#allocation4 + $0x8] sm:$0xff] %vm1224, %v1556
      %1589 = vst.msk [vmem:[#allocation4 + $0x10] sm:$0xff] %vm1224, %v1557
      %1590 = vst.msk [vmem:[#allocation4 + $0x18] sm:$0xff] %vm1224, %v1558
      %1591 = vst.msk [vmem:[#allocation4 + $0x20] sm:$0xff] %vm1224, %v1559
      %1592 = vst.msk [vmem:[#allocation4 + $0x28] sm:$0xff] %vm1224, %v1560
      %1593 = vst.msk [vmem:[#allocation4 + $0x30] sm:$0xff] %vm1224, %v1561
      %1594 = vst.msk [vmem:[#allocation4 + $0x38] sm:$0xff] %vm1224, %v1562
      %1595 = vst.msk [vmem:[#allocation4 + $0x40] sm:$0xff] %vm1224, %v1563
      %1596 = vst.msk [vmem:[#allocation4 + $0x48] sm:$0xff] %vm1224, %v1564
      %1597 = vst.msk [vmem:[#allocation4 + $0x50] sm:$0xff] %vm1224, %v1565
      %1598 = vst.msk [vmem:[#allocation4 + $0x58] sm:$0xff] %vm1224, %v1566
      %1599 = vst.msk [vmem:[#allocation4 + $0x60] sm:$0xff] %vm1224, %v1567
      %1600 = vst.msk [vmem:[#allocation4 + $0x68] sm:$0xff] %vm1224, %v1568
      %1601 = vst.msk [vmem:[#allocation4 + $0x70] sm:$0xff] %vm1224, %v1569
      %1602 = vst.msk [vmem:[#allocation4 + $0x78] sm:$0xff] %vm1224, %v1570
      %1603 = vst.msk [vmem:[#allocation4 + $0x80] sm:$0xff] %vm1224, %v1571
      %1604 = vst.msk [vmem:[#allocation4 + $0x88] sm:$0xff] %vm1224, %v1572
      %1605 = vst.msk [vmem:[#allocation4 + $0x90] sm:$0xff] %vm1224, %v1573
      %1606 = vst.msk [vmem:[#allocation4 + $0x98] sm:$0xff] %vm1224, %v1574
      %1607 = vst.msk [vmem:[#allocation4 + $0xa0] sm:$0xff] %vm1224, %v1575
      %1608 = vst.msk [vmem:[#allocation4 + $0xa8] sm:$0xff] %vm1224, %v1576
      %1609 = vst.msk [vmem:[#allocation4 + $0xb0] sm:$0xff] %vm1224, %v1577
      %1610 = vst.msk [vmem:[#allocation4 + $0xb8] sm:$0xff] %vm1224, %v1578
      %1611 = vst.msk [vmem:[#allocation4 + $0xc0] sm:$0xff] %vm1224, %v1579
      %1612 = vst.msk [vmem:[#allocation4 + $0xc8] sm:$0xff] %vm1224, %v1580
      %1613 = vst.msk [vmem:[#allocation4 + $0xd0] sm:$0xff] %vm1224, %v1581
      %1614 = vst.msk [vmem:[#allocation4 + $0xd8] sm:$0xff] %vm1224, %v1582
      %1615 = vst.msk [vmem:[#allocation4 + $0xe0] sm:$0xff] %vm1224, %v1583
      %1616 = vst.msk [vmem:[#allocation4 + $0xe8] sm:$0xff] %vm1224, %v1584
      %1617 = vst.msk [vmem:[#allocation4 + $0xf0] sm:$0xff] %vm1224, %v1585
      %1618 = vst.msk [vmem:[#allocation4 + $0xf8] sm:$0xff] %vm1224, %v1586
    $region17: #{tpu_custom_call.1} parent=1 // pred_fallthru
      _
    // Predicated region
    $region18: #{tpu_custom_call.1} parent=1 // pred_check
      %p1619 = pneg %p23
    $region19: #{tpu_custom_call.1} parent=1 // pred_check_branch
      %1621 = sbr.rel (%p1619) target = $region21
    $region20: #{tpu_custom_call.1} parent=1 // pred_region
      %v1622 = vld [vmem:[#allocation3] sm:$0xff]
      %v1623 = vld [vmem:[#allocation3 + $0x8] sm:$0xff]
      %v1624 = vld [vmem:[#allocation3 + $0x10] sm:$0xff]
      %v1625 = vld [vmem:[#allocation3 + $0x18] sm:$0xff]
      %v1626 = vld [vmem:[#allocation3 + $0x20] sm:$0xff]
      %v1627 = vld [vmem:[#allocation3 + $0x28] sm:$0xff]
      %v1628 = vld [vmem:[#allocation3 + $0x30] sm:$0xff]
      %v1629 = vld [vmem:[#allocation3 + $0x38] sm:$0xff]
      %v1630 = vld [vmem:[#allocation3 + $0x40] sm:$0xff]
      %v1631 = vld [vmem:[#allocation3 + $0x48] sm:$0xff]
      %v1632 = vld [vmem:[#allocation3 + $0x50] sm:$0xff]
      %v1633 = vld [vmem:[#allocation3 + $0x58] sm:$0xff]
      %v1634 = vld [vmem:[#allocation3 + $0x60] sm:$0xff]
      %v1635 = vld [vmem:[#allocation3 + $0x68] sm:$0xff]
      %v1636 = vld [vmem:[#allocation3 + $0x70] sm:$0xff]
      %v1637 = vld [vmem:[#allocation3 + $0x78] sm:$0xff]
      %v1638 = vld [vmem:[#allocation3 + $0x80] sm:$0xff]
      %v1639 = vld [vmem:[#allocation3 + $0x88] sm:$0xff]
      %v1640 = vld [vmem:[#allocation3 + $0x90] sm:$0xff]
      %v1641 = vld [vmem:[#allocation3 + $0x98] sm:$0xff]
      %v1642 = vld [vmem:[#allocation3 + $0xa0] sm:$0xff]
      %v1643 = vld [vmem:[#allocation3 + $0xa8] sm:$0xff]
      %v1644 = vld [vmem:[#allocation3 + $0xb0] sm:$0xff]
      %v1645 = vld [vmem:[#allocation3 + $0xb8] sm:$0xff]
      %v1646 = vld [vmem:[#allocation3 + $0xc0] sm:$0xff]
      %v1647 = vld [vmem:[#allocation3 + $0xc8] sm:$0xff]
      %v1648 = vld [vmem:[#allocation3 + $0xd0] sm:$0xff]
      %v1649 = vld [vmem:[#allocation3 + $0xd8] sm:$0xff]
      %v1650 = vld [vmem:[#allocation3 + $0xe0] sm:$0xff]
      %v1651 = vld [vmem:[#allocation3 + $0xe8] sm:$0xff]
      %v1652 = vld [vmem:[#allocation3 + $0xf0] sm:$0xff]
      %v1653 = vld [vmem:[#allocation3 + $0xf8] sm:$0xff]
      %v1654 = vlog2.pop %v1622
      %v1655 = vmul.f32 %v1654, 0.6931472
      %v1656 = vlog2.pop %v1623
      %v1657 = vmul.f32 %v1656, 0.6931472
      %v1658 = vlog2.pop %v1624
      %v1659 = vmul.f32 %v1658, 0.6931472
      %v1660 = vlog2.pop %v1625
      %v1661 = vmul.f32 %v1660, 0.6931472
      %v1662 = vlog2.pop %v1626
      %v1663 = vmul.f32 %v1662, 0.6931472
      %v1664 = vlog2.pop %v1627
      %v1665 = vmul.f32 %v1664, 0.6931472
      %v1666 = vlog2.pop %v1628
      %v1667 = vmul.f32 %v1666, 0.6931472
      %v1668 = vlog2.pop %v1629
      %v1669 = vmul.f32 %v1668, 0.6931472
      %v1670 = vlog2.pop %v1630
      %v1671 = vmul.f32 %v1670, 0.6931472
      %v1672 = vlog2.pop %v1631
      %v1673 = vmul.f32 %v1672, 0.6931472
      %v1674 = vlog2.pop %v1632
      %v1675 = vmul.f32 %v1674, 0.6931472
      %v1676 = vlog2.pop %v1633
      %v1677 = vmul.f32 %v1676, 0.6931472
      %v1678 = vlog2.pop %v1634
      %v1679 = vmul.f32 %v1678, 0.6931472
      %v1680 = vlog2.pop %v1635
      %v1681 = vmul.f32 %v1680, 0.6931472
      %v1682 = vlog2.pop %v1636
      %v1683 = vmul.f32 %v1682, 0.6931472
      %v1684 = vlog2.pop %v1637
      %v1685 = vmul.f32 %v1684, 0.6931472
      %v1686 = vlog2.pop %v1638
      %v1687 = vmul.f32 %v1686, 0.6931472
      %v1688 = vlog2.pop %v1639
      %v1689 = vmul.f32 %v1688, 0.6931472
      %v1690 = vlog2.pop %v1640
      %v1691 = vmul.f32 %v1690, 0.6931472
      %v1692 = vlog2.pop %v1641
      %v1693 = vmul.f32 %v1692, 0.6931472
      %v1694 = vlog2.pop %v1642
      %v1695 = vmul.f32 %v1694, 0.6931472
      %v1696 = vlog2.pop %v1643
      %v1697 = vmul.f32 %v1696, 0.6931472
      %v1698 = vlog2.pop %v1644
      %v1699 = vmul.f32 %v1698, 0.6931472
      %v1700 = vlog2.pop %v1645
      %v1701 = vmul.f32 %v1700, 0.6931472
      %v1702 = vlog2.pop %v1646
      %v1703 = vmul.f32 %v1702, 0.6931472
      %v1704 = vlog2.pop %v1647
      %v1705 = vmul.f32 %v1704, 0.6931472
      %v1706 = vlog2.pop %v1648
      %v1707 = vmul.f32 %v1706, 0.6931472
      %v1708 = vlog2.pop %v1649
      %v1709 = vmul.f32 %v1708, 0.6931472
      %v1710 = vlog2.pop %v1650
      %v1711 = vmul.f32 %v1710, 0.6931472
      %v1712 = vlog2.pop %v1651
      %v1713 = vmul.f32 %v1712, 0.6931472
      %v1714 = vlog2.pop %v1652
      %v1715 = vmul.f32 %v1714, 0.6931472
      %v1716 = vlog2.pop %v1653
      %v1717 = vmul.f32 %v1716, 0.6931472
      %v1718 = vld [vmem:[#allocation2] sm:$0xff]
      %v1719 = vld [vmem:[#allocation2 + $0x8] sm:$0xff]
      %v1720 = vld [vmem:[#allocation2 + $0x10] sm:$0xff]
      %v1721 = vld [vmem:[#allocation2 + $0x18] sm:$0xff]
      %v1722 = vld [vmem:[#allocation2 + $0x20] sm:$0xff]
      %v1723 = vld [vmem:[#allocation2 + $0x28] sm:$0xff]
      %v1724 = vld [vmem:[#allocation2 + $0x30] sm:$0xff]
      %v1725 = vld [vmem:[#allocation2 + $0x38] sm:$0xff]
      %v1726 = vld [vmem:[#allocation2 + $0x40] sm:$0xff]
      %v1727 = vld [vmem:[#allocation2 + $0x48] sm:$0xff]
      %v1728 = vld [vmem:[#allocation2 + $0x50] sm:$0xff]
      %v1729 = vld [vmem:[#allocation2 + $0x58] sm:$0xff]
      %v1730 = vld [vmem:[#allocation2 + $0x60] sm:$0xff]
      %v1731 = vld [vmem:[#allocation2 + $0x68] sm:$0xff]
      %v1732 = vld [vmem:[#allocation2 + $0x70] sm:$0xff]
      %v1733 = vld [vmem:[#allocation2 + $0x78] sm:$0xff]
      %v1734 = vld [vmem:[#allocation2 + $0x80] sm:$0xff]
      %v1735 = vld [vmem:[#allocation2 + $0x88] sm:$0xff]
      %v1736 = vld [vmem:[#allocation2 + $0x90] sm:$0xff]
      %v1737 = vld [vmem:[#allocation2 + $0x98] sm:$0xff]
      %v1738 = vld [vmem:[#allocation2 + $0xa0] sm:$0xff]
      %v1739 = vld [vmem:[#allocation2 + $0xa8] sm:$0xff]
      %v1740 = vld [vmem:[#allocation2 + $0xb0] sm:$0xff]
      %v1741 = vld [vmem:[#allocation2 + $0xb8] sm:$0xff]
      %v1742 = vld [vmem:[#allocation2 + $0xc0] sm:$0xff]
      %v1743 = vld [vmem:[#allocation2 + $0xc8] sm:$0xff]
      %v1744 = vld [vmem:[#allocation2 + $0xd0] sm:$0xff]
      %v1745 = vld [vmem:[#allocation2 + $0xd8] sm:$0xff]
      %v1746 = vld [vmem:[#allocation2 + $0xe0] sm:$0xff]
      %v1747 = vld [vmem:[#allocation2 + $0xe8] sm:$0xff]
      %v1748 = vld [vmem:[#allocation2 + $0xf0] sm:$0xff]
      %v1749 = vld [vmem:[#allocation2 + $0xf8] sm:$0xff]
      %v1750 = vadd.f32 %v1655, %v1718
      %v1751 = vadd.f32 %v1657, %v1719
      %v1752 = vadd.f32 %v1659, %v1720
      %v1753 = vadd.f32 %v1661, %v1721
      %v1754 = vadd.f32 %v1663, %v1722
      %v1755 = vadd.f32 %v1665, %v1723
      %v1756 = vadd.f32 %v1667, %v1724
      %v1757 = vadd.f32 %v1669, %v1725
      %v1758 = vadd.f32 %v1671, %v1726
      %v1759 = vadd.f32 %v1673, %v1727
      %v1760 = vadd.f32 %v1675, %v1728
      %v1761 = vadd.f32 %v1677, %v1729
      %v1762 = vadd.f32 %v1679, %v1730
      %v1763 = vadd.f32 %v1681, %v1731
      %v1764 = vadd.f32 %v1683, %v1732
      %v1765 = vadd.f32 %v1685, %v1733
      %v1766 = vadd.f32 %v1687, %v1734
      %v1767 = vadd.f32 %v1689, %v1735
      %v1768 = vadd.f32 %v1691, %v1736
      %v1769 = vadd.f32 %v1693, %v1737
      %v1770 = vadd.f32 %v1695, %v1738
      %v1771 = vadd.f32 %v1697, %v1739
      %v1772 = vadd.f32 %v1699, %v1740
      %v1773 = vadd.f32 %v1701, %v1741
      %v1774 = vadd.f32 %v1703, %v1742
      %v1775 = vadd.f32 %v1705, %v1743
      %v1776 = vadd.f32 %v1707, %v1744
      %v1777 = vadd.f32 %v1709, %v1745
      %v1778 = vadd.f32 %v1711, %v1746
      %v1779 = vadd.f32 %v1713, %v1747
      %v1780 = vadd.f32 %v1715, %v1748
      %v1781 = vadd.f32 %v1717, %v1749
      %v1782 = vld [vmem:[#allocation4] sm:$0xff]
      %v1783 = vld [vmem:[#allocation4 + $0x8] sm:$0xff]
      %v1784 = vld [vmem:[#allocation4 + $0x10] sm:$0xff]
      %v1785 = vld [vmem:[#allocation4 + $0x18] sm:$0xff]
      %v1786 = vld [vmem:[#allocation4 + $0x20] sm:$0xff]
      %v1787 = vld [vmem:[#allocation4 + $0x28] sm:$0xff]
      %v1788 = vld [vmem:[#allocation4 + $0x30] sm:$0xff]
      %v1789 = vld [vmem:[#allocation4 + $0x38] sm:$0xff]
      %v1790 = vld [vmem:[#allocation4 + $0x40] sm:$0xff]
      %v1791 = vld [vmem:[#allocation4 + $0x48] sm:$0xff]
      %v1792 = vld [vmem:[#allocation4 + $0x50] sm:$0xff]
      %v1793 = vld [vmem:[#allocation4 + $0x58] sm:$0xff]
      %v1794 = vld [vmem:[#allocation4 + $0x60] sm:$0xff]
      %v1795 = vld [vmem:[#allocation4 + $0x68] sm:$0xff]
      %v1796 = vld [vmem:[#allocation4 + $0x70] sm:$0xff]
      %v1797 = vld [vmem:[#allocation4 + $0x78] sm:$0xff]
      %v1798 = vld [vmem:[#allocation4 + $0x80] sm:$0xff]
      %v1799 = vld [vmem:[#allocation4 + $0x88] sm:$0xff]
      %v1800 = vld [vmem:[#allocation4 + $0x90] sm:$0xff]
      %v1801 = vld [vmem:[#allocation4 + $0x98] sm:$0xff]
      %v1802 = vld [vmem:[#allocation4 + $0xa0] sm:$0xff]
      %v1803 = vld [vmem:[#allocation4 + $0xa8] sm:$0xff]
      %v1804 = vld [vmem:[#allocation4 + $0xb0] sm:$0xff]
      %v1805 = vld [vmem:[#allocation4 + $0xb8] sm:$0xff]
      %v1806 = vld [vmem:[#allocation4 + $0xc0] sm:$0xff]
      %v1807 = vld [vmem:[#allocation4 + $0xc8] sm:$0xff]
      %v1808 = vld [vmem:[#allocation4 + $0xd0] sm:$0xff]
      %v1809 = vld [vmem:[#allocation4 + $0xd8] sm:$0xff]
      %v1810 = vld [vmem:[#allocation4 + $0xe0] sm:$0xff]
      %v1811 = vld [vmem:[#allocation4 + $0xe8] sm:$0xff]
      %v1812 = vld [vmem:[#allocation4 + $0xf0] sm:$0xff]
      %v1813 = vld [vmem:[#allocation4 + $0xf8] sm:$0xff]
      %v1814 = vsub.f32 %v1750, %v1782
      %v1815 = vsub.f32 %v1751, %v1783
      %v1816 = vsub.f32 %v1752, %v1784
      %v1817 = vsub.f32 %v1753, %v1785
      %v1818 = vsub.f32 %v1754, %v1786
      %v1819 = vsub.f32 %v1755, %v1787
      %v1820 = vsub.f32 %v1756, %v1788
      %v1821 = vsub.f32 %v1757, %v1789
      %v1822 = vsub.f32 %v1758, %v1790
      %v1823 = vsub.f32 %v1759, %v1791
      %v1824 = vsub.f32 %v1760, %v1792
      %v1825 = vsub.f32 %v1761, %v1793
      %v1826 = vsub.f32 %v1762, %v1794
      %v1827 = vsub.f32 %v1763, %v1795
      %v1828 = vsub.f32 %v1764, %v1796
      %v1829 = vsub.f32 %v1765, %v1797
      %v1830 = vsub.f32 %v1766, %v1798
      %v1831 = vsub.f32 %v1767, %v1799
      %v1832 = vsub.f32 %v1768, %v1800
      %v1833 = vsub.f32 %v1769, %v1801
      %v1834 = vsub.f32 %v1770, %v1802
      %v1835 = vsub.f32 %v1771, %v1803
      %v1836 = vsub.f32 %v1772, %v1804
      %v1837 = vsub.f32 %v1773, %v1805
      %v1838 = vsub.f32 %v1774, %v1806
      %v1839 = vsub.f32 %v1775, %v1807
      %v1840 = vsub.f32 %v1776, %v1808
      %v1841 = vsub.f32 %v1777, %v1809
      %v1842 = vsub.f32 %v1778, %v1810
      %v1843 = vsub.f32 %v1779, %v1811
      %v1844 = vsub.f32 %v1780, %v1812
      %v1845 = vsub.f32 %v1781, %v1813
      %v1846 = vsel %vm198, %v1814, 0.0
      %v1847 = vsel %vm199, %v1815, 0.0
      %v1848 = vsel %vm200, %v1816, 0.0
      %v1849 = vsel %vm201, %v1817, 0.0
      %v1850 = vsel %vm202, %v1818, 0.0
      %v1851 = vsel %vm203, %v1819, 0.0
      %v1852 = vsel %vm204, %v1820, 0.0
      %v1853 = vsel %vm205, %v1821, 0.0
      %v1854 = vsel %vm206, %v1822, 0.0
      %v1855 = vsel %vm207, %v1823, 0.0
      %v1856 = vsel %vm208, %v1824, 0.0
      %v1857 = vsel %vm209, %v1825, 0.0
      %v1858 = vsel %vm210, %v1826, 0.0
      %v1859 = vsel %vm211, %v1827, 0.0
      %v1860 = vsel %vm212, %v1828, 0.0
      %v1861 = vsel %vm213, %v1829, 0.0
      %v1862 = vsel %vm214, %v1830, 0.0
      %v1863 = vsel %vm215, %v1831, 0.0
      %v1864 = vsel %vm216, %v1832, 0.0
      %v1865 = vsel %vm217, %v1833, 0.0
      %v1866 = vsel %vm218, %v1834, 0.0
      %v1867 = vsel %vm219, %v1835, 0.0
      %v1868 = vsel %vm220, %v1836, 0.0
      %v1869 = vsel %vm221, %v1837, 0.0
      %v1870 = vsel %vm222, %v1838, 0.0
      %v1871 = vsel %vm223, %v1839, 0.0
      %v1872 = vsel %vm224, %v1840, 0.0
      %v1873 = vsel %vm225, %v1841, 0.0
      %v1874 = vsel %vm226, %v1842, 0.0
      %v1875 = vsel %vm227, %v1843, 0.0
      %v1876 = vsel %vm228, %v1844, 0.0
      %v1877 = vsel %vm229, %v1845, 0.0
      %v1878 = vsel %vm1224, %v1846, 0.0
      %v1879 = vsel %vm1224, %v1847, 0.0
      %v1880 = vadd.f32 %v1878, %v1879
      %v1881 = vsel %vm1224, %v1848, 0.0
      %v1882 = vadd.f32 %v1880, %v1881
      %v1883 = vsel %vm1224, %v1849, 0.0
      %v1884 = vadd.f32 %v1882, %v1883
      %v1885 = vsel %vm1224, %v1850, 0.0
      %v1886 = vadd.f32 %v1884, %v1885
      %v1887 = vsel %vm1224, %v1851, 0.0
      %v1888 = vadd.f32 %v1886, %v1887
      %v1889 = vsel %vm1224, %v1852, 0.0
      %v1890 = vadd.f32 %v1888, %v1889
      %v1891 = vsel %vm1224, %v1853, 0.0
      %v1892 = vadd.f32 %v1890, %v1891
      %v1893 = vsel %vm1224, %v1854, 0.0
      %v1894 = vadd.f32 %v1892, %v1893
      %v1895 = vsel %vm1224, %v1855, 0.0
      %v1896 = vadd.f32 %v1894, %v1895
      %v1897 = vsel %vm1224, %v1856, 0.0
      %v1898 = vadd.f32 %v1896, %v1897
      %v1899 = vsel %vm1224, %v1857, 0.0
      %v1900 = vadd.f32 %v1898, %v1899
      %v1901 = vsel %vm1224, %v1858, 0.0
      %v1902 = vadd.f32 %v1900, %v1901
      %v1903 = vsel %vm1224, %v1859, 0.0
      %v1904 = vadd.f32 %v1902, %v1903
      %v1905 = vsel %vm1224, %v1860, 0.0
      %v1906 = vadd.f32 %v1904, %v1905
      %v1907 = vsel %vm1224, %v1861, 0.0
      %v1908 = vadd.f32 %v1906, %v1907
      %v1909 = vsel %vm1224, %v1862, 0.0
      %v1910 = vadd.f32 %v1908, %v1909
      %v1911 = vsel %vm1224, %v1863, 0.0
      %v1912 = vadd.f32 %v1910, %v1911
      %v1913 = vsel %vm1224, %v1864, 0.0
      %v1914 = vadd.f32 %v1912, %v1913
      %v1915 = vsel %vm1224, %v1865, 0.0
      %v1916 = vadd.f32 %v1914, %v1915
      %v1917 = vsel %vm1224, %v1866, 0.0
      %v1918 = vadd.f32 %v1916, %v1917
      %v1919 = vsel %vm1224, %v1867, 0.0
      %v1920 = vadd.f32 %v1918, %v1919
      %v1921 = vsel %vm1224, %v1868, 0.0
      %v1922 = vadd.f32 %v1920, %v1921
      %v1923 = vsel %vm1224, %v1869, 0.0
      %v1924 = vadd.f32 %v1922, %v1923
      %v1925 = vsel %vm1224, %v1870, 0.0
      %v1926 = vadd.f32 %v1924, %v1925
      %v1927 = vsel %vm1224, %v1871, 0.0
      %v1928 = vadd.f32 %v1926, %v1927
      %v1929 = vsel %vm1224, %v1872, 0.0
      %v1930 = vadd.f32 %v1928, %v1929
      %v1931 = vsel %vm1224, %v1873, 0.0
      %v1932 = vadd.f32 %v1930, %v1931
      %v1933 = vsel %vm1224, %v1874, 0.0
      %v1934 = vadd.f32 %v1932, %v1933
      %v1935 = vsel %vm1224, %v1875, 0.0
      %v1936 = vadd.f32 %v1934, %v1935
      %v1937 = vsel %vm1224, %v1876, 0.0
      %v1938 = vadd.f32 %v1936, %v1937
      %v1939 = vsel %vm1224, %v1877, 0.0
      %v1940 = vadd.f32 %v1938, %v1939
      %1941 = vadd.xlane.f32.xlu0 %v1940
      %v1942 = vpop.xlane.xlu0 %1941
      %v1943 = vrot.slane %v1942, 4
      %v1944 = vadd.f32 %v1942, %v1943
      %v1945 = vrot.slane %v1944, 2
      %v1946 = vadd.f32 %v1944, %v1945
      %v1947 = vrot.slane %v1946, 1
      %v1948 = vadd.f32 %v1946, %v1947
      %s1949 = vtos %v1948
      %v1950 = vstv %s1949
      %1951 = vst [vmem:[#allocation8] sm:$0x1] %v1950
    $region21: #{tpu_custom_call.1} parent=1 // pred_fallthru
      _
    // Predicated region
    $region22: #{tpu_custom_call.1} parent=1 // pred_check
      _
    $region23: #{tpu_custom_call.1} parent=1 // pred_check_branch
      %1953 = sbr.rel (0) target = $region25
    $region24: #{tpu_custom_call.1} parent=1 // pred_region
      %s1955 = ssub.s32 16, 16
      %1956 = vsyncadd [#allocation7], %s1955
      %s1958 = sshll.u32 [#allocation8], 4
      %s1959 = int_to_ptr.vmem [resolvable:$true] %s1958
      %1961 = dma.vmem_to_hbm [thread:$0]  %s1959, 16, %s1, [#allocation7]
    $region25: #{tpu_custom_call.1} parent=1 // pred_fallthru
      _
    // Predicated region
    $region26: #{tpu_custom_call.1} parent=1 // pred_check
      _
    $region27: #{tpu_custom_call.1} parent=1 // pred_check_branch
      %1963 = sbr.rel (0) target = $region29
    $region28: #{tpu_custom_call.1} parent=1 // pred_region
      %1964 = dma.done [#allocation7], 16
    $region29: #{tpu_custom_call.1} parent=1 // pred_fallthru
      _
    %1965 = vsyncpa [#allocation6], 1
    %1966 = vsyncpa [#allocation7], 1

</llo_original>
